<compile_context>
chip_gen: v7x
topology: tpu7x:2x2x1
jax: 0.10.0
libtpu: 0.0.40
codegen_flags: <defaults>
</compile_context>

<pallas_src>
from functools import partial

import numpy as np
import jax
import jax.numpy as jnp
from jax.experimental import pallas as pl
from jax.experimental.pallas import tpu as pltpu


def _block_kernel(lhs_ref, t_ref, bias_ref, gamma_ref, beta_ref,
                  p1_ref, p2_ref, selt_ref, sel_ref, *rest,
                  eps, has_scale_shift):
    # lhs_ref  : (M, 3*WP2C)  bf16   row-tap-concatenated padded input (M = B*H)
    # t_ref    : (3*WP2C, WC) bf16   block-Toeplitz conv weight (all 3 ky rows)
    # bias/gamma/beta : (1, WC) f32  channel rows tiled over W
    # p1_ref   : (WC, G) f32         group-sum * 1/(cs*H*W)
    # p2_ref   : (G, WC) f32         lane broadcast back
    # selt_ref : (B, M)  f32         per-sample row selector
    # sel_ref  : (M, B)  f32         row broadcast back
    # rest     : [scale_ref (B,WC), shift_ref (B,WC),] o_ref (M, WC)
    if has_scale_shift:
        scale_ref, shift_ref, o_ref = rest
    else:
        (o_ref,) = rest

    # --- Conv2d(3x3, padding=1): ONE matmul (bf16 operands, f32 accumulate) ---
    y = jnp.dot(lhs_ref[...], t_ref[...], preferred_element_type=jnp.float32)
    y = y + bias_ref[...]                                      # (M, WC) f32

    # --- GroupNorm statistics (all f32, factorized small matmuls) ------------
    t1 = jnp.dot(y, p1_ref[...], preferred_element_type=jnp.float32)       # (M, G)
    t2 = jnp.dot(y * y, p1_ref[...], preferred_element_type=jnp.float32)   # (M, G)
    gs = jnp.dot(selt_ref[...], t1, preferred_element_type=jnp.float32)    # (B, G) mean
    gs2 = jnp.dot(selt_ref[...], t2, preferred_element_type=jnp.float32)   # (B, G) E[x^2]
    mean_b = jnp.dot(gs, p2_ref[...], preferred_element_type=jnp.float32)  # (B, WC)
    ex2_b = jnp.dot(gs2, p2_ref[...], preferred_element_type=jnp.float32)  # (B, WC)
    inv_b = jax.lax.rsqrt(ex2_b - mean_b * mean_b + eps)                   # (B, WC)

    # --- fuse GroupNorm affine [+ FiLM scale/shift] into one (a, c) pair ------
    a_b = gamma_ref[...] * inv_b                               # (B, WC)
    c_b = beta_ref[...] - mean_b * a_b                         # (B, WC)
    if has_scale_shift:
        s1 = scale_ref[...] + 1.0
        a_b = a_b * s1
        c_b = c_b * s1 + shift_ref[...]

    # Broadcast per-sample (a, c) to rows with a tiny (M,B)@(B,WC) matmul,
    # then a single FMA over the big slab.
    a_rows = jnp.dot(sel_ref[...], a_b, preferred_element_type=jnp.float32)
    c_rows = jnp.dot(sel_ref[...], c_b, preferred_element_type=jnp.float32)
    y = y * a_rows + c_rows

    # --- SiLU: exp + approx reciprocal both on EUP (keeps VALU slots free) ----
    o_ref[...] = y * pl.reciprocal(1.0 + jnp.exp(-y), approx=True)


def block_forward(x, conv_w, conv_b, gn_weight, gn_bias, scale_shift=None,
                  *, groups=8, eps=1e-5):
    """Pallas equivalent of Block(dim, dim_out, groups).forward(x, scale_shift)."""
    B, C_in, H, W = x.shape
    C_out = conv_w.shape[0]
    assert conv_w.shape == (C_out, C_in, 3, 3), "expected a 3x3 conv weight"
    assert C_out % groups == 0, "groups must divide dim_out"
    cs = C_out // groups
    WP2C = (W + 2) * C_in
    K = 3 * WP2C
    WC = W * C_out
    M = B * H

    # ---- layout prep (trace-time / XLA) --------------------------------------
    # TODO(synk): for chained Blocks keep activations in the lane-dense
    # (B*H, W*C) layout across calls to avoid these NCHW<->NHWC HBM round trips.
    x_nhwc = jnp.transpose(x.astype(jnp.float32), (0, 2, 3, 1))          # (B,H,W,Cin)
    xp = jnp.pad(x_nhwc, ((0, 0), (1, 1), (1, 1), (0, 0))).reshape(B, H + 2, WP2C)
    lhs = jnp.concatenate([xp[:, 0:H], xp[:, 1:H + 1], xp[:, 2:H + 2]], axis=-1)
    lhs = lhs.reshape(M, K).astype(jnp.bfloat16)                          # (M, 3*WP2C)

    # Block-Toeplitz conv weight with all three kernel rows stacked along K.
    # TODO(synk): at large (W, C_in) tile the WC lane axis / use per-tap weights
    # instead of materializing T (it is only ~3*C_in/WP2C dense).
    w_t = jnp.transpose(conv_w.astype(jnp.float32), (2, 3, 1, 0))         # (3,3,Cin,Cout)
    blk = w_t.reshape(3, 3 * C_in, C_out)
    T = jnp.zeros((3, WP2C, WC), jnp.float32)
    for wi in range(W):
        T = T.at[:, wi * C_in:(wi + 3) * C_in, wi * C_out:(wi + 1) * C_out].set(blk)
    T = T.reshape(K, WC).astype(jnp.bfloat16)

    bias_f = jnp.tile(conv_b.astype(jnp.float32), W).reshape(1, WC)
    gamma_f = jnp.tile(gn_weight.astype(jnp.float32), W).reshape(1, WC)
    beta_f = jnp.tile(gn_bias.astype(jnp.float32), W).reshape(1, WC)

    # Factorized group pooling (numpy trace-time constants).
    gid = np.arange(C_out) // cs
    p1_small = (gid[:, None] == np.arange(groups)[None, :]).astype(np.float32)  # (Cout,G)
    P1 = jnp.asarray(np.tile(p1_small, (W, 1)) / float(cs * H * W))       # (WC, G)
    P2 = jnp.asarray(np.tile(p1_small.T, (1, W)))                         # (G, WC)

    # Per-sample row selector for the flattened (B*H) sublane axis.
    selt_np = np.repeat(np.eye(B, dtype=np.float32), H, axis=1)           # (B, M)
    selT = jnp.asarray(selt_np)
    sel = jnp.asarray(selt_np.T)                                          # (M, B)

    has_ss = scale_shift is not None
    inputs = [lhs, T, bias_f, gamma_f, beta_f, P1, P2, selT, sel]
    in_specs = [
        pl.BlockSpec((M, K), lambda i: (0, 0)),
        pl.BlockSpec((K, WC), lambda i: (0, 0)),
        pl.BlockSpec((1, WC), lambda i: (0, 0)),
        pl.BlockSpec((1, WC), lambda i: (0, 0)),
        pl.BlockSpec((1, WC), lambda i: (0, 0)),
        pl.BlockSpec((WC, groups), lambda i: (0, 0)),
        pl.BlockSpec((groups, WC), lambda i: (0, 0)),
        pl.BlockSpec((B, M), lambda i: (0, 0)),
        pl.BlockSpec((M, B), lambda i: (0, 0)),
    ]
    if has_ss:
        scale, shift = scale_shift
        scale_f = jnp.tile(scale.reshape(B, C_out).astype(jnp.float32), (1, W))  # (B, WC)
        shift_f = jnp.tile(shift.reshape(B, C_out).astype(jnp.float32), (1, W))
        inputs += [scale_f, shift_f]
        in_specs += [pl.BlockSpec((B, WC), lambda i: (0, 0)),
                     pl.BlockSpec((B, WC), lambda i: (0, 0))]

    flops = int(2 * M * K * WC + 4 * M * WC * groups + 4 * B * groups * WC
                + 4 * M * B * WC + 10 * M * WC)
    transcendentals = int(2 * M * WC)            # exp + approx reciprocal (SiLU)
    bytes_accessed = int(2 * (M * K + K * WC)
                         + 4 * (3 * WC + 2 * WC * groups + 2 * B * M
                                + (2 * B * WC if has_ss else 0) + M * WC))

    out = pl.pallas_call(
        partial(_block_kernel, eps=float(eps), has_scale_shift=has_ss),
        out_shape=jax.ShapeDtypeStruct((M, WC), jnp.float32),
        grid=(1,),
        in_specs=in_specs,
        out_specs=pl.BlockSpec((M, WC), lambda i: (0, 0)),
        compiler_params=pltpu.CompilerParams(
            dimension_semantics=("arbitrary",)),
        cost_estimate=pl.CostEstimate(flops=flops,
                                      transcendentals=transcendentals,
                                      bytes_accessed=bytes_accessed),
    )(*inputs)

    # (B*H, W*C_out) -> (B, C_out, H, W) to match the PyTorch NCHW output.
    return jnp.transpose(out.reshape(B, H, W, C_out), (0, 3, 1, 2))


def _reference(x, conv_w, conv_b, gn_w, gn_b, scale_shift, groups, eps=1e-5):
    y = jax.lax.conv_general_dilated(
        x, conv_w, window_strides=(1, 1), padding=((1, 1), (1, 1)),
        dimension_numbers=("NCHW", "OIHW", "NCHW"),
        precision=jax.lax.Precision.HIGHEST)
    y = y + conv_b.reshape(1, -1, 1, 1)
    B, C, H, W = y.shape
    cs = C // groups
    yg = y.reshape(B, groups, cs, H, W)
    mean = yg.mean(axis=(2, 3, 4), keepdims=True)
    var = yg.var(axis=(2, 3, 4), keepdims=True)
    yn = ((yg - mean) / jnp.sqrt(var + eps)).reshape(B, C, H, W)
    yn = yn * gn_w.reshape(1, -1, 1, 1) + gn_b.reshape(1, -1, 1, 1)
    if scale_shift is not None:
        s, t = scale_shift
        yn = yn * (s + 1.0) + t
    return yn * jax.nn.sigmoid(yn)


if __name__ == "__main__":
    key = jax.random.PRNGKey(0)
    k1, k2, k3, k4, k5, k6, k7 = jax.random.split(key, 7)

    B, C_in, C_out, H, W, groups = 2, 4, 32, 16, 16, 8

    x = jax.random.normal(k1, (B, C_in, H, W), jnp.float32)
    conv_w = 0.2 * jax.random.normal(k2, (C_out, C_in, 3, 3), jnp.float32)
    conv_b = 0.1 * jax.random.normal(k3, (C_out,), jnp.float32)
    gn_w = 1.0 + 0.1 * jax.random.normal(k4, (C_out,), jnp.float32)
    gn_b = 0.1 * jax.random.normal(k5, (C_out,), jnp.float32)
    scale = 0.1 * jax.random.normal(k6, (B, C_out, 1, 1), jnp.float32)
    shift = 0.1 * jax.random.normal(k7, (B, C_out, 1, 1), jnp.float32)

    out = block_forward(x, conv_w, conv_b, gn_w, gn_b,
                        scale_shift=(scale, shift), groups=groups)
    out = jax.block_until_ready(out)

    ref = _reference(x, conv_w, conv_b, gn_w, gn_b, (scale, shift), groups)
    assert out.shape == (B, C_out, H, W)
    assert out.dtype == jnp.float32
    # Conv operands run on the MXU in bfloat16 (f32 accumulate), so compare
    # against the f32 reference with a bf16-appropriate tolerance.
    assert jnp.allclose(out, ref, atol=3e-2, rtol=3e-2), \
        f"max abs err = {float(jnp.max(jnp.abs(out - ref)))}"

    print("KERNEL_OK")
</pallas_src>

<mosaic_0001>
module attributes {stable_mosaic.version = 11 : i64} {
  func.func @_block_kernel(%arg0: i32, %arg1: memref<32x216xbf16, #tpu.memory_space<vmem>>, %arg2: memref<216x512xbf16, #tpu.memory_space<vmem>>, %arg3: memref<1x512xf32, #tpu.memory_space<vmem>>, %arg4: memref<1x512xf32, #tpu.memory_space<vmem>>, %arg5: memref<1x512xf32, #tpu.memory_space<vmem>>, %arg6: memref<512x8xf32, #tpu.memory_space<vmem>>, %arg7: memref<8x512xf32, #tpu.memory_space<vmem>>, %arg8: memref<2x32xf32, #tpu.memory_space<vmem>>, %arg9: memref<32x2xf32, #tpu.memory_space<vmem>>, %arg10: memref<2x512xf32, #tpu.memory_space<vmem>>, %arg11: memref<2x512xf32, #tpu.memory_space<vmem>>, %arg12: memref<32x512xf32, #tpu.memory_space<vmem>>) attributes {dimension_semantics = [#tpu.dimension_semantics<arbitrary>], iteration_bounds = array<i64: 1>, scalar_prefetch = 0 : i64, scratch_operands = 0 : i64, tpu.core_type = #tpu.core_type<tc>, window_params = [{pipeline_mode = #tpu.pipeline_mode<synchronous>, transform_indices = @transform_0, window_bounds = array<i64: 32, 216>}, {pipeline_mode = #tpu.pipeline_mode<synchronous>, transform_indices = @transform_1, window_bounds = array<i64: 216, 512>}, {pipeline_mode = #tpu.pipeline_mode<synchronous>, transform_indices = @transform_2, window_bounds = array<i64: 1, 512>}, {pipeline_mode = #tpu.pipeline_mode<synchronous>, transform_indices = @transform_3, window_bounds = array<i64: 1, 512>}, {pipeline_mode = #tpu.pipeline_mode<synchronous>, transform_indices = @transform_4, window_bounds = array<i64: 1, 512>}, {pipeline_mode = #tpu.pipeline_mode<synchronous>, transform_indices = @transform_5, window_bounds = array<i64: 512, 8>}, {pipeline_mode = #tpu.pipeline_mode<synchronous>, transform_indices = @transform_6, window_bounds = array<i64: 8, 512>}, {pipeline_mode = #tpu.pipeline_mode<synchronous>, transform_indices = @transform_7, window_bounds = array<i64: 2, 32>}, {pipeline_mode = #tpu.pipeline_mode<synchronous>, transform_indices = @transform_8, window_bounds = array<i64: 32, 2>}, {pipeline_mode = #tpu.pipeline_mode<synchronous>, transform_indices = @transform_9, window_bounds = array<i64: 2, 512>}, {pipeline_mode = #tpu.pipeline_mode<synchronous>, transform_indices = @transform_10, window_bounds = array<i64: 2, 512>}, {pipeline_mode = #tpu.pipeline_mode<synchronous>, transform_indices = @transform_11, window_bounds = array<i64: 32, 512>}]} {
    %c0 = arith.constant 0 : index
    %c0_0 = arith.constant 0 : index
    %0 = vector.load %arg1[%c0, %c0_0] : memref<32x216xbf16, #tpu.memory_space<vmem>>, vector<32x216xbf16>
    %c0_1 = arith.constant 0 : index
    %c0_2 = arith.constant 0 : index
    %1 = vector.load %arg2[%c0_1, %c0_2] : memref<216x512xbf16, #tpu.memory_space<vmem>>, vector<216x512xbf16>
    %cst = arith.constant dense<0.000000e+00> : vector<32x512xf32>
    %2 = tpu.matmul %0, %1, %cst {dimension_numbers = #tpu.dot_dimension_numbers<[1], [0], [0], [1], [0, 0, 1, 1], [], []>} : vector<32x216xbf16>, vector<216x512xbf16>, vector<32x512xf32> -> vector<32x512xf32>
    %c0_3 = arith.constant 0 : index
    %c0_4 = arith.constant 0 : index
    %3 = vector.load %arg3[%c0_3, %c0_4] : memref<1x512xf32, #tpu.memory_space<vmem>>, vector<1x512xf32>
    %4 = vector.broadcast %3 : vector<1x512xf32> to vector<32x512xf32>
    %5 = arith.addf %2, %4 : vector<32x512xf32>
    %c0_5 = arith.constant 0 : index
    %c0_6 = arith.constant 0 : index
    %6 = vector.load %arg6[%c0_5, %c0_6] : memref<512x8xf32, #tpu.memory_space<vmem>>, vector<512x8xf32>
    %cst_7 = arith.constant dense<0.000000e+00> : vector<32x8xf32>
    %7 = tpu.matmul %5, %6, %cst_7 {dimension_numbers = #tpu.dot_dimension_numbers<[1], [0], [0], [1], [0, 0, 1, 1], [], []>} : vector<32x512xf32>, vector<512x8xf32>, vector<32x8xf32> -> vector<32x8xf32>
    %8 = arith.mulf %5, %5 : vector<32x512xf32>
    %c0_8 = arith.constant 0 : index
    %c0_9 = arith.constant 0 : index
    %9 = vector.load %arg6[%c0_8, %c0_9] : memref<512x8xf32, #tpu.memory_space<vmem>>, vector<512x8xf32>
    %cst_10 = arith.constant dense<0.000000e+00> : vector<32x8xf32>
    %10 = tpu.matmul %8, %9, %cst_10 {dimension_numbers = #tpu.dot_dimension_numbers<[1], [0], [0], [1], [0, 0, 1, 1], [], []>} : vector<32x512xf32>, vector<512x8xf32>, vector<32x8xf32> -> vector<32x8xf32>
    %c0_11 = arith.constant 0 : index
    %c0_12 = arith.constant 0 : index
    %11 = vector.load %arg8[%c0_11, %c0_12] : memref<2x32xf32, #tpu.memory_space<vmem>>, vector<2x32xf32>
    %cst_13 = arith.constant dense<0.000000e+00> : vector<2x8xf32>
    %12 = tpu.matmul %11, %7, %cst_13 {dimension_numbers = #tpu.dot_dimension_numbers<[1], [0], [0], [1], [0, 0, 1, 1], [], []>} : vector<2x32xf32>, vector<32x8xf32>, vector<2x8xf32> -> vector<2x8xf32>
    %c0_14 = arith.constant 0 : index
    %c0_15 = arith.constant 0 : index
    %13 = vector.load %arg8[%c0_14, %c0_15] : memref<2x32xf32, #tpu.memory_space<vmem>>, vector<2x32xf32>
    %cst_16 = arith.constant dense<0.000000e+00> : vector<2x8xf32>
    %14 = tpu.matmul %13, %10, %cst_16 {dimension_numbers = #tpu.dot_dimension_numbers<[1], [0], [0], [1], [0, 0, 1, 1], [], []>} : vector<2x32xf32>, vector<32x8xf32>, vector<2x8xf32> -> vector<2x8xf32>
    %c0_17 = arith.constant 0 : index
    %c0_18 = arith.constant 0 : index
    %15 = vector.load %arg7[%c0_17, %c0_18] : memref<8x512xf32, #tpu.memory_space<vmem>>, vector<8x512xf32>
    %cst_19 = arith.constant dense<0.000000e+00> : vector<2x512xf32>
    %16 = tpu.matmul %12, %15, %cst_19 {dimension_numbers = #tpu.dot_dimension_numbers<[1], [0], [0], [1], [0, 0, 1, 1], [], []>} : vector<2x8xf32>, vector<8x512xf32>, vector<2x512xf32> -> vector<2x512xf32>
    %c0_20 = arith.constant 0 : index
    %c0_21 = arith.constant 0 : index
    %17 = vector.load %arg7[%c0_20, %c0_21] : memref<8x512xf32, #tpu.memory_space<vmem>>, vector<8x512xf32>
    %cst_22 = arith.constant dense<0.000000e+00> : vector<2x512xf32>
    %18 = tpu.matmul %14, %17, %cst_22 {dimension_numbers = #tpu.dot_dimension_numbers<[1], [0], [0], [1], [0, 0, 1, 1], [], []>} : vector<2x8xf32>, vector<8x512xf32>, vector<2x512xf32> -> vector<2x512xf32>
    %19 = arith.mulf %16, %16 : vector<2x512xf32>
    %20 = arith.subf %18, %19 : vector<2x512xf32>
    %cst_23 = arith.constant 9.99999974E-6 : f32
    %21 = vector.broadcast %cst_23 : f32 to vector<2x512xf32>
    %22 = arith.addf %20, %21 : vector<2x512xf32>
    %23 = math.rsqrt %22 : vector<2x512xf32>
    %c0_24 = arith.constant 0 : index
    %c0_25 = arith.constant 0 : index
    %24 = vector.load %arg4[%c0_24, %c0_25] : memref<1x512xf32, #tpu.memory_space<vmem>>, vector<1x512xf32>
    %25 = vector.broadcast %24 : vector<1x512xf32> to vector<2x512xf32>
    %26 = arith.mulf %25, %23 : vector<2x512xf32>
    %c0_26 = arith.constant 0 : index
    %c0_27 = arith.constant 0 : index
    %27 = vector.load %arg5[%c0_26, %c0_27] : memref<1x512xf32, #tpu.memory_space<vmem>>, vector<1x512xf32>
    %28 = arith.mulf %16, %26 : vector<2x512xf32>
    %29 = vector.broadcast %27 : vector<1x512xf32> to vector<2x512xf32>
    %30 = arith.subf %29, %28 : vector<2x512xf32>
    %c0_28 = arith.constant 0 : index
    %c0_29 = arith.constant 0 : index
    %31 = vector.load %arg10[%c0_28, %c0_29] : memref<2x512xf32, #tpu.memory_space<vmem>>, vector<2x512xf32>
    %cst_30 = arith.constant 1.000000e+00 : f32
    %32 = vector.broadcast %cst_30 : f32 to vector<2x512xf32>
    %33 = arith.addf %31, %32 : vector<2x512xf32>
    %34 = arith.mulf %26, %33 : vector<2x512xf32>
    %35 = arith.mulf %30, %33 : vector<2x512xf32>
    %c0_31 = arith.constant 0 : index
    %c0_32 = arith.constant 0 : index
    %36 = vector.load %arg11[%c0_31, %c0_32] : memref<2x512xf32, #tpu.memory_space<vmem>>, vector<2x512xf32>
    %37 = arith.addf %35, %36 : vector<2x512xf32>
    %c0_33 = arith.constant 0 : index
    %c0_34 = arith.constant 0 : index
    %38 = vector.load %arg9[%c0_33, %c0_34] : memref<32x2xf32, #tpu.memory_space<vmem>>, vector<32x2xf32>
    %cst_35 = arith.constant dense<0.000000e+00> : vector<32x512xf32>
    %39 = tpu.matmul %38, %34, %cst_35 {dimension_numbers = #tpu.dot_dimension_numbers<[1], [0], [0], [1], [0, 0, 1, 1], [], []>} : vector<32x2xf32>, vector<2x512xf32>, vector<32x512xf32> -> vector<32x512xf32>
    %c0_36 = arith.constant 0 : index
    %c0_37 = arith.constant 0 : index
    %40 = vector.load %arg9[%c0_36, %c0_37] : memref<32x2xf32, #tpu.memory_space<vmem>>, vector<32x2xf32>
    %cst_38 = arith.constant dense<0.000000e+00> : vector<32x512xf32>
    %41 = tpu.matmul %40, %37, %cst_38 {dimension_numbers = #tpu.dot_dimension_numbers<[1], [0], [0], [1], [0, 0, 1, 1], [], []>} : vector<32x2xf32>, vector<2x512xf32>, vector<32x512xf32> -> vector<32x512xf32>
    %42 = arith.mulf %5, %39 : vector<32x512xf32>
    %43 = arith.addf %42, %41 : vector<32x512xf32>
    %cst_39 = arith.constant 0.000000e+00 : f32
    %44 = vector.broadcast %cst_39 : f32 to vector<32x512xf32>
    %45 = arith.subf %44, %43 : vector<32x512xf32>
    %46 = math.exp %45 : vector<32x512xf32>
    %cst_40 = arith.constant 1.000000e+00 : f32
    %47 = vector.broadcast %cst_40 : f32 to vector<32x512xf32>
    %48 = arith.addf %47, %46 : vector<32x512xf32>
    %49 = tpu.reciprocal %48 {approx = true} : vector<32x512xf32> -> vector<32x512xf32>
    %50 = arith.mulf %43, %49 : vector<32x512xf32>
    %c0_41 = arith.constant 0 : index
    %c0_42 = arith.constant 0 : index
    %51 = vector.load %arg12[%c0_41, %c0_42] : memref<32x512xf32, #tpu.memory_space<vmem>>, vector<32x512xf32>
    tpu.vector_store %arg12[%c0_41, %c0_42], %50 {strides = array<i32>} : memref<32x512xf32, #tpu.memory_space<vmem>>, vector<32x512xf32>,
    return
  }
  func.func @transform_0(%arg0: i32) -> (i32, i32) {
    %c0_i32 = arith.constant 0 : i32
    %c0_i32_0 = arith.constant 0 : i32
    %c0_i32_1 = arith.constant 0 : i32
    return %c0_i32, %c0_i32_0 : i32, i32
  }
  func.func @transform_1(%arg0: i32) -> (i32, i32) {
    %c0_i32 = arith.constant 0 : i32
    %c0_i32_0 = arith.constant 0 : i32
    %c0_i32_1 = arith.constant 0 : i32
    return %c0_i32, %c0_i32_0 : i32, i32
  }
  func.func @transform_2(%arg0: i32) -> (i32, i32) {
    %c0_i32 = arith.constant 0 : i32
    %c0_i32_0 = arith.constant 0 : i32
    %c0_i32_1 = arith.constant 0 : i32
    return %c0_i32, %c0_i32_0 : i32, i32
  }
  func.func @transform_3(%arg0: i32) -> (i32, i32) {
    %c0_i32 = arith.constant 0 : i32
    %c0_i32_0 = arith.constant 0 : i32
    %c0_i32_1 = arith.constant 0 : i32
    return %c0_i32, %c0_i32_0 : i32, i32
  }
  func.func @transform_4(%arg0: i32) -> (i32, i32) {
    %c0_i32 = arith.constant 0 : i32
    %c0_i32_0 = arith.constant 0 : i32
    %c0_i32_1 = arith.constant 0 : i32
    return %c0_i32, %c0_i32_0 : i32, i32
  }
  func.func @transform_5(%arg0: i32) -> (i32, i32) {
    %c0_i32 = arith.constant 0 : i32
    %c0_i32_0 = arith.constant 0 : i32
    %c0_i32_1 = arith.constant 0 : i32
    return %c0_i32, %c0_i32_0 : i32, i32
  }
  func.func @transform_6(%arg0: i32) -> (i32, i32) {
    %c0_i32 = arith.constant 0 : i32
    %c0_i32_0 = arith.constant 0 : i32
    %c0_i32_1 = arith.constant 0 : i32
    return %c0_i32, %c0_i32_0 : i32, i32
  }
  func.func @transform_7(%arg0: i32) -> (i32, i32) {
    %c0_i32 = arith.constant 0 : i32
    %c0_i32_0 = arith.constant 0 : i32
    %c0_i32_1 = arith.constant 0 : i32
    return %c0_i32, %c0_i32_0 : i32, i32
  }
  func.func @transform_8(%arg0: i32) -> (i32, i32) {
    %c0_i32 = arith.constant 0 : i32
    %c0_i32_0 = arith.constant 0 : i32
    %c0_i32_1 = arith.constant 0 : i32
    return %c0_i32, %c0_i32_0 : i32, i32
  }
  func.func @transform_9(%arg0: i32) -> (i32, i32) {
    %c0_i32 = arith.constant 0 : i32
    %c0_i32_0 = arith.constant 0 : i32
    %c0_i32_1 = arith.constant 0 : i32
    return %c0_i32, %c0_i32_0 : i32, i32
  }
  func.func @transform_10(%arg0: i32) -> (i32, i32) {
    %c0_i32 = arith.constant 0 : i32
    %c0_i32_0 = arith.constant 0 : i32
    %c0_i32_1 = arith.constant 0 : i32
    return %c0_i32, %c0_i32_0 : i32, i32
  }
  func.func @transform_11(%arg0: i32) -> (i32, i32) {
    %c0_i32 = arith.constant 0 : i32
    %c0_i32_0 = arith.constant 0 : i32
    %c0_i32_1 = arith.constant 0 : i32
    return %c0_i32, %c0_i32_0 : i32, i32
  }
}

</mosaic_0001>

<llo_original>
// kernel: tpu_custom_call.1
$region0: #{tpu_custom_call.1}
  #allocation0 [shape = 'u32[]', space=smem, size = 0x4, offset = 0x4, fixed_abs, tag = 'smem constant byte address 0x4 - core index']
  #allocation1 [shape = 'u32[144,128]{1,0:T(1,128)}', space=vmem, size = 0x12000, scoped, tag = 'internal scratch']
  %s0 = inlined_call_operand.vmem [shape: bf16[32,216], index: 0, kind: input, shape index: {}]
  %s1 = inlined_call_operand.vmem [shape: bf16[216,512], index: 1, kind: input, shape index: {}]
  %s2 = inlined_call_operand.vmem [shape: f32[1,512], index: 2, kind: input, shape index: {}]
  %s3 = inlined_call_operand.vmem [shape: f32[1,512], index: 3, kind: input, shape index: {}]
  %s4 = inlined_call_operand.vmem [shape: f32[1,512], index: 4, kind: input, shape index: {}]
  %s5 = inlined_call_operand.vmem [shape: f32[512,8], index: 5, kind: input, shape index: {}]
  %s6 = inlined_call_operand.vmem [shape: f32[8,512], index: 6, kind: input, shape index: {}]
  %s7 = inlined_call_operand.vmem [shape: f32[2,32], index: 7, kind: input, shape index: {}]
  %s8 = inlined_call_operand.vmem [shape: f32[32,2], index: 8, kind: input, shape index: {}]
  %s9 = inlined_call_operand.vmem [shape: f32[2,512], index: 9, kind: input, shape index: {}]
  %s10 = inlined_call_operand.vmem [shape: f32[2,512], index: 10, kind: input, shape index: {}]
  %s11 = inlined_call_operand.hbm [shape: f32[32,512], index: 11, kind: output, shape index: {}]
  %s12 = sld [smem:[#allocation0]]
  $region54: #{tpu_custom_call.1} parent=0
    _
  %s14 = ssub.s32 1, %s12
  %s15 = scalar_select 0, %s14, %s12
  $region1: #{tpu_custom_call.1} parent=0
    #allocation2 [shape = 'u8[65536]{0}', space=vmem, size = 0x10000, scoped, tag = 'output window, operand 0, single buffered']
    #allocation3 [shape = 's32[1]{0}', space=sflag, size = 0x4, scoped, tag = 'scoped memory for tpu_custom_call.1']
    %16 = vsyncpa [#allocation3], 0
    // Predicated region
    $region2: #{tpu_custom_call.1} parent=1 // pred_check
      _
    $region3: #{tpu_custom_call.1} parent=1 // pred_check_branch
      %18 = sbr.rel (0) target = $region5
    $region4: #{tpu_custom_call.1} parent=1 // pred_region
      _
    $region5: #{tpu_custom_call.1} parent=1 // pred_fallthru
      _
    // Predicated region
    $region6: #{tpu_custom_call.1} parent=1 // pred_check
      _
    $region7: #{tpu_custom_call.1} parent=1 // pred_check_branch
      %20 = sbr.rel (0) target = $region9
    $region8: #{tpu_custom_call.1} parent=1 // pred_region
      _
    $region9: #{tpu_custom_call.1} parent=1 // pred_fallthru
      _
    // Predicated region
    $region10: #{tpu_custom_call.1} parent=1 // pred_check
      _
    $region11: #{tpu_custom_call.1} parent=1 // pred_check_branch
      %22 = sbr.rel (0) target = $region13
    $region12: #{tpu_custom_call.1} parent=1 // pred_region
      _
    $region13: #{tpu_custom_call.1} parent=1 // pred_fallthru
      _
    // Predicated region
    $region14: #{tpu_custom_call.1} parent=1 // pred_check
      _
    $region15: #{tpu_custom_call.1} parent=1 // pred_check_branch
      %24 = sbr.rel (0) target = $region17
    $region16: #{tpu_custom_call.1} parent=1 // pred_region
      _
    $region17: #{tpu_custom_call.1} parent=1 // pred_fallthru
      _
    // Predicated region
    $region18: #{tpu_custom_call.1} parent=1 // pred_check
      _
    $region19: #{tpu_custom_call.1} parent=1 // pred_check_branch
      %26 = sbr.rel (0) target = $region21
    $region20: #{tpu_custom_call.1} parent=1 // pred_region
      _
    $region21: #{tpu_custom_call.1} parent=1 // pred_fallthru
      _
    // Predicated region
    $region22: #{tpu_custom_call.1} parent=1 // pred_check
      _
    $region23: #{tpu_custom_call.1} parent=1 // pred_check_branch
      %28 = sbr.rel (0) target = $region25
    $region24: #{tpu_custom_call.1} parent=1 // pred_region
      _
    $region25: #{tpu_custom_call.1} parent=1 // pred_fallthru
      _
    // Predicated region
    $region26: #{tpu_custom_call.1} parent=1 // pred_check
      _
    $region27: #{tpu_custom_call.1} parent=1 // pred_check_branch
      %30 = sbr.rel (0) target = $region29
    $region28: #{tpu_custom_call.1} parent=1 // pred_region
      _
    $region29: #{tpu_custom_call.1} parent=1 // pred_fallthru
      _
    // Predicated region
    $region30: #{tpu_custom_call.1} parent=1 // pred_check
      _
    $region31: #{tpu_custom_call.1} parent=1 // pred_check_branch
      %32 = sbr.rel (0) target = $region33
    $region32: #{tpu_custom_call.1} parent=1 // pred_region
      _
    $region33: #{tpu_custom_call.1} parent=1 // pred_fallthru
      _
    // Predicated region
    $region34: #{tpu_custom_call.1} parent=1 // pred_check
      _
    $region35: #{tpu_custom_call.1} parent=1 // pred_check_branch
      %34 = sbr.rel (0) target = $region37
    $region36: #{tpu_custom_call.1} parent=1 // pred_region
      _
    $region37: #{tpu_custom_call.1} parent=1 // pred_fallthru
      _
    // Predicated region
    $region38: #{tpu_custom_call.1} parent=1 // pred_check
      _
    $region39: #{tpu_custom_call.1} parent=1 // pred_check_branch
      %36 = sbr.rel (0) target = $region41
    $region40: #{tpu_custom_call.1} parent=1 // pred_region
      _
    $region41: #{tpu_custom_call.1} parent=1 // pred_fallthru
      _
    // Predicated region
    $region42: #{tpu_custom_call.1} parent=1 // pred_check
      _
    $region43: #{tpu_custom_call.1} parent=1 // pred_check_branch
      %38 = sbr.rel (0) target = $region45
    $region44: #{tpu_custom_call.1} parent=1 // pred_region
      _
    $region45: #{tpu_custom_call.1} parent=1 // pred_fallthru
      _
    %v40 = vld [vmem:[%s0] sm:$0xff]
    %v41 = vld [vmem:[%s0 + $0x8] sm:$0xff]
    %v42 = vld [vmem:[%s0 + $0x10] sm:$0xff]
    %v43 = vld [vmem:[%s0 + $0x18] sm:$0xff]
    %v44 = vld [vmem:[%s1] sm:$0xff]
    %v45 = vld [vmem:[%s1 + $0x8] sm:$0xff]
    %v46 = vld [vmem:[%s1 + $0x10] sm:$0xff]
    %v47 = vld [vmem:[%s1 + $0x18] sm:$0xff]
    %v48 = vld [vmem:[%s1 + $0x20] sm:$0xff]
    %v49 = vld [vmem:[%s1 + $0x28] sm:$0xff]
    %v50 = vld [vmem:[%s1 + $0x30] sm:$0xff]
    %v51 = vld [vmem:[%s1 + $0x38] sm:$0xff]
    %v52 = vld [vmem:[%s1 + $0x40] sm:$0xff]
    %v53 = vld [vmem:[%s1 + $0x48] sm:$0xff]
    %v54 = vld [vmem:[%s1 + $0x50] sm:$0xff]
    %v55 = vld [vmem:[%s1 + $0x58] sm:$0xff]
    %v56 = vld [vmem:[%s1 + $0x60] sm:$0xff]
    %v57 = vld [vmem:[%s1 + $0x68] sm:$0xff]
    %v58 = vld [vmem:[%s1 + $0x70] sm:$0xff]
    %v59 = vld [vmem:[%s1 + $0x78] sm:$0xff]
    %v60 = vld [vmem:[%s1 + $0x80] sm:$0xff]
    %v61 = vld [vmem:[%s1 + $0x88] sm:$0xff]
    %v62 = vld [vmem:[%s1 + $0x90] sm:$0xff]
    %v63 = vld [vmem:[%s1 + $0x98] sm:$0xff]
    %v64 = vld [vmem:[%s1 + $0xa0] sm:$0xff]
    %v65 = vld [vmem:[%s1 + $0xa8] sm:$0xff]
    %v66 = vld [vmem:[%s1 + $0xb0] sm:$0xff]
    %v67 = vld [vmem:[%s1 + $0xb8] sm:$0xff]
    %v68 = vld [vmem:[%s1 + $0xc0] sm:$0xff]
    %v69 = vld [vmem:[%s1 + $0xc8] sm:$0xff]
    %v70 = vld [vmem:[%s1 + $0xd0] sm:$0xff]
    %v71 = vld [vmem:[%s1 + $0xd8] sm:$0xff]
    %v72 = vld [vmem:[%s1 + $0xe0] sm:$0xff]
    %v73 = vld [vmem:[%s1 + $0xe8] sm:$0xff]
    %v74 = vld [vmem:[%s1 + $0xf0] sm:$0xff]
    %v75 = vld [vmem:[%s1 + $0xf8] sm:$0xff]
    %v76 = vld [vmem:[%s1 + $0x100] sm:$0xff]
    %v77 = vld [vmem:[%s1 + $0x108] sm:$0xff]
    %v78 = vld [vmem:[%s1 + $0x110] sm:$0xff]
    %v79 = vld [vmem:[%s1 + $0x118] sm:$0xff]
    %v80 = vld [vmem:[%s1 + $0x120] sm:$0xff]
    %v81 = vld [vmem:[%s1 + $0x128] sm:$0xff]
    %v82 = vld [vmem:[%s1 + $0x130] sm:$0xff]
    %v83 = vld [vmem:[%s1 + $0x138] sm:$0xff]
    %v84 = vld [vmem:[%s1 + $0x140] sm:$0xff]
    %v85 = vld [vmem:[%s1 + $0x148] sm:$0xff]
    %v86 = vld [vmem:[%s1 + $0x150] sm:$0xff]
    %v87 = vld [vmem:[%s1 + $0x158] sm:$0xff]
    %v88 = vld [vmem:[%s1 + $0x160] sm:$0xff]
    %v89 = vld [vmem:[%s1 + $0x168] sm:$0xff]
    %v90 = vld [vmem:[%s1 + $0x170] sm:$0xff]
    %v91 = vld [vmem:[%s1 + $0x178] sm:$0xff]
    %v92 = vld [vmem:[%s1 + $0x180] sm:$0xff]
    %v93 = vld [vmem:[%s1 + $0x188] sm:$0xff]
    %v94 = vld [vmem:[%s1 + $0x190] sm:$0xff]
    %v95 = vld [vmem:[%s1 + $0x198] sm:$0xff]
    %v96 = vld [vmem:[%s1 + $0x1a0] sm:$0xff]
    %v97 = vld [vmem:[%s1 + $0x1a8] sm:$0xff]
    %v98 = vld [vmem:[%s2] sm:$0xf]
    %v100 = vlaneseq
    %v101 = vshrl.u32 %v100, 7
    %v102 = vsub.s32 0, %v101
    %v103 = vrot.slane %v98, %v102
    %v104 = vlaneseq
    %v105 = vshrl.u32 %v104, 7
    %v106 = vsub.s32 1, %v105
    %v107 = vrot.slane %v98, %v106
    %v108 = vlaneseq
    %v109 = vshrl.u32 %v108, 7
    %v110 = vsub.s32 2, %v109
    %v111 = vrot.slane %v98, %v110
    %v112 = vlaneseq
    %v113 = vshrl.u32 %v112, 7
    %v114 = vsub.s32 3, %v113
    %v115 = vrot.slane %v98, %v114
    %v124 = vunpack.c.l.b16 %v40
    %v125 = vunpack.c.h.b16 %v40
    %v126 = vunpack.c.l.b16 %v41
    %v127 = vunpack.c.h.b16 %v41
    %v128 = vunpack.c.l.b16 %v42
    %v129 = vunpack.c.h.b16 %v42
    %v130 = vunpack.c.l.b16 %v43
    %v131 = vunpack.c.h.b16 %v43
    %v132 = vpack.c.b16 %v126, %v124
    %v133 = vpack.c.b16 %v127, %v125
    %v134 = vpack.c.b16 %v130, %v128
    %v135 = vpack.c.b16 %v131, %v129
    %v192 = vunpack.c.l.b16 %v44
    %v193 = vunpack.c.h.b16 %v44
    %v194 = vunpack.c.l.b16 %v45
    %v195 = vunpack.c.h.b16 %v45
    %v196 = vunpack.c.l.b16 %v46
    %v197 = vunpack.c.h.b16 %v46
    %v198 = vunpack.c.l.b16 %v47
    %v199 = vunpack.c.h.b16 %v47
    %v200 = vunpack.c.l.b16 %v48
    %v201 = vunpack.c.h.b16 %v48
    %v202 = vunpack.c.l.b16 %v49
    %v203 = vunpack.c.h.b16 %v49
    %v204 = vunpack.c.l.b16 %v50
    %v205 = vunpack.c.h.b16 %v50
    %v206 = vunpack.c.l.b16 %v51
    %v207 = vunpack.c.h.b16 %v51
    %v208 = vunpack.c.l.b16 %v52
    %v209 = vunpack.c.h.b16 %v52
    %v210 = vunpack.c.l.b16 %v53
    %v211 = vunpack.c.h.b16 %v53
    %v212 = vunpack.c.l.b16 %v54
    %v213 = vunpack.c.h.b16 %v54
    %v214 = vunpack.c.l.b16 %v55
    %v215 = vunpack.c.h.b16 %v55
    %v216 = vunpack.c.l.b16 %v56
    %v217 = vunpack.c.h.b16 %v56
    %v218 = vunpack.c.l.b16 %v57
    %v219 = vunpack.c.h.b16 %v57
    %v220 = vunpack.c.l.b16 %v58
    %v221 = vunpack.c.h.b16 %v58
    %v222 = vunpack.c.l.b16 %v59
    %v223 = vunpack.c.h.b16 %v59
    %v224 = vunpack.c.l.b16 %v60
    %v225 = vunpack.c.h.b16 %v60
    %v226 = vunpack.c.l.b16 %v61
    %v227 = vunpack.c.h.b16 %v61
    %v228 = vunpack.c.l.b16 %v62
    %v229 = vunpack.c.h.b16 %v62
    %v230 = vunpack.c.l.b16 %v63
    %v231 = vunpack.c.h.b16 %v63
    %v232 = vunpack.c.l.b16 %v64
    %v233 = vunpack.c.h.b16 %v64
    %v234 = vunpack.c.l.b16 %v65
    %v235 = vunpack.c.h.b16 %v65
    %v236 = vunpack.c.l.b16 %v66
    %v237 = vunpack.c.h.b16 %v66
    %v238 = vunpack.c.l.b16 %v67
    %v239 = vunpack.c.h.b16 %v67
    %v240 = vunpack.c.l.b16 %v68
    %v241 = vunpack.c.h.b16 %v68
    %v242 = vunpack.c.l.b16 %v69
    %v243 = vunpack.c.h.b16 %v69
    %v244 = vunpack.c.l.b16 %v70
    %v245 = vunpack.c.h.b16 %v70
    %v246 = vunpack.c.l.b16 %v71
    %v247 = vunpack.c.h.b16 %v71
    %v248 = vunpack.c.l.b16 %v72
    %v249 = vunpack.c.h.b16 %v72
    %v250 = vunpack.c.l.b16 %v73
    %v251 = vunpack.c.h.b16 %v73
    %v252 = vunpack.c.l.b16 %v74
    %v253 = vunpack.c.h.b16 %v74
    %v254 = vunpack.c.l.b16 %v75
    %v255 = vunpack.c.h.b16 %v75
    %v256 = vunpack.c.l.b16 %v76
    %v257 = vunpack.c.h.b16 %v76
    %v258 = vunpack.c.l.b16 %v77
    %v259 = vunpack.c.h.b16 %v77
    %v260 = vunpack.c.l.b16 %v78
    %v261 = vunpack.c.h.b16 %v78
    %v262 = vunpack.c.l.b16 %v79
    %v263 = vunpack.c.h.b16 %v79
    %v264 = vunpack.c.l.b16 %v80
    %v265 = vunpack.c.h.b16 %v80
    %v266 = vunpack.c.l.b16 %v81
    %v267 = vunpack.c.h.b16 %v81
    %v268 = vunpack.c.l.b16 %v82
    %v269 = vunpack.c.h.b16 %v82
    %v270 = vunpack.c.l.b16 %v83
    %v271 = vunpack.c.h.b16 %v83
    %v272 = vunpack.c.l.b16 %v84
    %v273 = vunpack.c.h.b16 %v84
    %v274 = vunpack.c.l.b16 %v85
    %v275 = vunpack.c.h.b16 %v85
    %v276 = vunpack.c.l.b16 %v86
    %v277 = vunpack.c.h.b16 %v86
    %v278 = vunpack.c.l.b16 %v87
    %v279 = vunpack.c.h.b16 %v87
    %v280 = vunpack.c.l.b16 %v88
    %v281 = vunpack.c.h.b16 %v88
    %v282 = vunpack.c.l.b16 %v89
    %v283 = vunpack.c.h.b16 %v89
    %v284 = vunpack.c.l.b16 %v90
    %v285 = vunpack.c.h.b16 %v90
    %v286 = vunpack.c.l.b16 %v91
    %v287 = vunpack.c.h.b16 %v91
    %v288 = vunpack.c.l.b16 %v92
    %v289 = vunpack.c.h.b16 %v92
    %v290 = vunpack.c.l.b16 %v93
    %v291 = vunpack.c.h.b16 %v93
    %v292 = vunpack.c.l.b16 %v94
    %v293 = vunpack.c.h.b16 %v94
    %v294 = vunpack.c.l.b16 %v95
    %v295 = vunpack.c.h.b16 %v95
    %v296 = vunpack.c.l.b16 %v96
    %v297 = vunpack.c.h.b16 %v96
    %v298 = vunpack.c.l.b16 %v97
    %v299 = vunpack.c.h.b16 %v97
    %v300 = vpack.c.b16 %v196, %v192
    %v301 = vpack.c.b16 %v197, %v193
    %v302 = vpack.c.b16 %v198, %v194
    %v303 = vpack.c.b16 %v199, %v195
    %v304 = vpack.c.b16 %v204, %v200
    %v305 = vpack.c.b16 %v205, %v201
    %v306 = vpack.c.b16 %v206, %v202
    %v307 = vpack.c.b16 %v207, %v203
    %v308 = vpack.c.b16 %v212, %v208
    %v309 = vpack.c.b16 %v213, %v209
    %v310 = vpack.c.b16 %v214, %v210
    %v311 = vpack.c.b16 %v215, %v211
    %v312 = vpack.c.b16 %v220, %v216
    %v313 = vpack.c.b16 %v221, %v217
    %v314 = vpack.c.b16 %v222, %v218
    %v315 = vpack.c.b16 %v223, %v219
    %v316 = vpack.c.b16 %v228, %v224
    %v317 = vpack.c.b16 %v229, %v225
    %v318 = vpack.c.b16 %v230, %v226
    %v319 = vpack.c.b16 %v231, %v227
    %v320 = vpack.c.b16 %v236, %v232
    %v321 = vpack.c.b16 %v237, %v233
    %v322 = vpack.c.b16 %v238, %v234
    %v323 = vpack.c.b16 %v239, %v235
    %v324 = vpack.c.b16 %v244, %v240
    %v325 = vpack.c.b16 %v245, %v241
    %v326 = vpack.c.b16 %v246, %v242
    %v327 = vpack.c.b16 %v247, %v243
    %v328 = vpack.c.b16 %v252, %v248
    %v329 = vpack.c.b16 %v253, %v249
    %v330 = vpack.c.b16 %v254, %v250
    %v331 = vpack.c.b16 %v255, %v251
    %v332 = vpack.c.b16 %v260, %v256
    %v333 = vpack.c.b16 %v261, %v257
    %v334 = vpack.c.b16 %v262, %v258
    %v335 = vpack.c.b16 %v263, %v259
    %v336 = vpack.c.b16 %v268, %v264
    %v337 = vpack.c.b16 %v269, %v265
    %v338 = vpack.c.b16 %v270, %v266
    %v339 = vpack.c.b16 %v271, %v267
    %v340 = vpack.c.b16 %v276, %v272
    %v341 = vpack.c.b16 %v277, %v273
    %v342 = vpack.c.b16 %v278, %v274
    %v343 = vpack.c.b16 %v279, %v275
    %v344 = vpack.c.b16 %v284, %v280
    %v345 = vpack.c.b16 %v285, %v281
    %v346 = vpack.c.b16 %v286, %v282
    %v347 = vpack.c.b16 %v287, %v283
    %v348 = vpack.c.b16 %v292, %v288
    %v349 = vpack.c.b16 %v293, %v289
    %v350 = vpack.c.b16 %v294, %v290
    %v351 = vpack.c.b16 %v295, %v291
    %v352 = vpack.c.b16 %v296, %v296
    %v353 = vpack.c.b16 %v297, %v297
    %v354 = vpack.c.b16 %v298, %v298
    %v355 = vpack.c.b16 %v299, %v299
    %vm408 = vcmask 719872
    %v410 = vsel %vm408, %v133, 0
    %v413 = vsel %vm408, %v135, 0
    %vm415 = vcmask 1043456
    %v417 = vsel %vm415, %v352, 0
    %v420 = vsel %vm415, %v353, 0
    %v423 = vsel %vm415, %v354, 0
    %v426 = vsel %vm415, %v355, 0
    %428 = vmatprep.subr.bf16.mxu0 %v301
    %429 = vmatpush1.bf16.msra.mxu0 %v300
    %430 = vmatprep.subr.bf16.mxu0 %v305
    %431 = vmatpush1.bf16.msra.mxu0 %v304
    %432 = vmatprep.subr.bf16.mxu0 %v309
    %433 = vmatpush1.bf16.msra.mxu0 %v308
    %434 = vmatprep.subr.bf16.mxu0 %v313
    %435 = vmatpush1.bf16.msra.mxu0 %v312
    %436 = vmatprep.subr.bf16.mxu0 %v317
    %437 = vmatpush1.bf16.msra.mxu0 %v316
    %438 = vmatprep.subr.bf16.mxu0 %v321
    %439 = vmatpush1.bf16.msra.mxu0 %v320
    %440 = vmatprep.subr.bf16.mxu0 %v325
    %441 = vmatpush1.bf16.msra.mxu0 %v324
    %442 = vmatprep.subr.bf16.mxu0 %v329
    %443 = vmatpush1.bf16.msra.mxu0 %v328
    %444 = vmatprep.subr.bf16.mxu0 %v333
    %445 = vmatpush1.bf16.msra.mxu0 %v332
    %446 = vmatprep.subr.bf16.mxu0 %v337
    %447 = vmatpush1.bf16.msra.mxu0 %v336
    %448 = vmatprep.subr.bf16.mxu0 %v341
    %449 = vmatpush1.bf16.msra.mxu0 %v340
    %450 = vmatprep.subr.bf16.mxu0 %v345
    %451 = vmatpush1.bf16.msra.mxu0 %v344
    %452 = vmatprep.subr.bf16.mxu0 %v349
    %453 = vmatpush1.bf16.msra.mxu0 %v348
    %454 = vmatprep.subr.bf16.mxu0 %v420
    %455 = vmatpush1.bf16.msra.mxu0 %v417
    %456 = vmatprep.subr.bf16.mxu0 0
    %457 = vmatpush1.bf16.msra.mxu0 0
    %458 = vmatprep.subr.bf16.mxu0 0
    %459 = vmatpush1.bf16.msra.mxu0 0
    %460 = vmatprep.mubr.bf16.mxu0 %v410
    %461 = vmatmul.mubr.bf16.gmra.mrb[0].mxu0 %v132
    %v462 = vpop.f32.mrb[0].mxu0
    %v463 = vadd.f32 %v103, %v462
    %v464 = vpop.f32.mrb[0].mxu0
    %v465 = vadd.f32 %v107, %v464
    %v466 = vpop.f32.mrb[0].mxu0
    %v467 = vadd.f32 %v103, %v466
    %v468 = vpop.f32.mrb[0].mxu0
    %v469 = vadd.f32 %v107, %v468
    %470 = vmatprep.mubr.bf16.mxu0 %v413
    %471 = vmatmul.mubr.bf16.gmra.mrb[0].mxu0 %v134
    %v472 = vpop.f32.mrb[0].mxu0
    %v473 = vadd.f32 %v103, %v472
    %v474 = vpop.f32.mrb[0].mxu0
    %v475 = vadd.f32 %v107, %v474
    %v476 = vpop.f32.mrb[0].mxu0
    %v477 = vadd.f32 %v103, %v476
    %v478 = vpop.f32.mrb[0].mxu0
    %v479 = vadd.f32 %v107, %v478
    %480 = vdwg.mxu0
    %481 = vmatprep.subr.bf16.mxu0 %v303
    %482 = vmatpush1.bf16.msra.mxu0 %v302
    %483 = vmatprep.subr.bf16.mxu0 %v307
    %484 = vmatpush1.bf16.msra.mxu0 %v306
    %485 = vmatprep.subr.bf16.mxu0 %v311
    %486 = vmatpush1.bf16.msra.mxu0 %v310
    %487 = vmatprep.subr.bf16.mxu0 %v315
    %488 = vmatpush1.bf16.msra.mxu0 %v314
    %489 = vmatprep.subr.bf16.mxu0 %v319
    %490 = vmatpush1.bf16.msra.mxu0 %v318
    %491 = vmatprep.subr.bf16.mxu0 %v323
    %492 = vmatpush1.bf16.msra.mxu0 %v322
    %493 = vmatprep.subr.bf16.mxu0 %v327
    %494 = vmatpush1.bf16.msra.mxu0 %v326
    %495 = vmatprep.subr.bf16.mxu0 %v331
    %496 = vmatpush1.bf16.msra.mxu0 %v330
    %497 = vmatprep.subr.bf16.mxu0 %v335
    %498 = vmatpush1.bf16.msra.mxu0 %v334
    %499 = vmatprep.subr.bf16.mxu0 %v339
    %500 = vmatpush1.bf16.msra.mxu0 %v338
    %501 = vmatprep.subr.bf16.mxu0 %v343
    %502 = vmatpush1.bf16.msra.mxu0 %v342
    %503 = vmatprep.subr.bf16.mxu0 %v347
    %504 = vmatpush1.bf16.msra.mxu0 %v346
    %505 = vmatprep.subr.bf16.mxu0 %v351
    %506 = vmatpush1.bf16.msra.mxu0 %v350
    %507 = vmatprep.subr.bf16.mxu0 %v426
    %508 = vmatpush1.bf16.msra.mxu0 %v423
    %509 = vmatprep.subr.bf16.mxu0 0
    %510 = vmatpush1.bf16.msra.mxu0 0
    %511 = vmatprep.subr.bf16.mxu0 0
    %512 = vmatpush1.bf16.msra.mxu0 0
    %513 = vmatprep.mubr.bf16.mxu0 %v410
    %514 = vmatmul.mubr.bf16.gmra.mrb[0].mxu0 %v132
    %v515 = vpop.f32.mrb[0].mxu0
    %v516 = vadd.f32 %v111, %v515
    %v517 = vpop.f32.mrb[0].mxu0
    %v518 = vadd.f32 %v115, %v517
    %v519 = vpop.f32.mrb[0].mxu0
    %v520 = vadd.f32 %v111, %v519
    %v521 = vpop.f32.mrb[0].mxu0
    %v522 = vadd.f32 %v115, %v521
    %523 = vmatprep.mubr.bf16.mxu0 %v413
    %524 = vmatmul.mubr.bf16.gmra.mrb[0].mxu0 %v134
    %v525 = vpop.f32.mrb[0].mxu0
    %v526 = vadd.f32 %v111, %v525
    %v527 = vpop.f32.mrb[0].mxu0
    %v528 = vadd.f32 %v115, %v527
    %v529 = vpop.f32.mrb[0].mxu0
    %v530 = vadd.f32 %v111, %v529
    %v531 = vpop.f32.mrb[0].mxu0
    %v532 = vadd.f32 %v115, %v531
    %533 = vdwg.mxu0
    %v534 = vld [vmem:[%s5] sm:$0xff]
    %v535 = vld [vmem:[%s5 + $0x8] sm:$0xff]
    %v536 = vld [vmem:[%s5 + $0x10] sm:$0xff]
    %v537 = vld [vmem:[%s5 + $0x18] sm:$0xff]
    %v538 = vld [vmem:[%s5 + $0x20] sm:$0xff]
    %v539 = vld [vmem:[%s5 + $0x28] sm:$0xff]
    %v540 = vld [vmem:[%s5 + $0x30] sm:$0xff]
    %v541 = vld [vmem:[%s5 + $0x38] sm:$0xff]
    %v542 = vld [vmem:[%s5 + $0x40] sm:$0xff]
    %v543 = vld [vmem:[%s5 + $0x48] sm:$0xff]
    %v544 = vld [vmem:[%s5 + $0x50] sm:$0xff]
    %v545 = vld [vmem:[%s5 + $0x58] sm:$0xff]
    %v546 = vld [vmem:[%s5 + $0x60] sm:$0xff]
    %v547 = vld [vmem:[%s5 + $0x68] sm:$0xff]
    %v548 = vld [vmem:[%s5 + $0x70] sm:$0xff]
    %v549 = vld [vmem:[%s5 + $0x78] sm:$0xff]
    %v550 = vld [vmem:[%s5 + $0x80] sm:$0xff]
    %v551 = vld [vmem:[%s5 + $0x88] sm:$0xff]
    %v552 = vld [vmem:[%s5 + $0x90] sm:$0xff]
    %v553 = vld [vmem:[%s5 + $0x98] sm:$0xff]
    %v554 = vld [vmem:[%s5 + $0xa0] sm:$0xff]
    %v555 = vld [vmem:[%s5 + $0xa8] sm:$0xff]
    %v556 = vld [vmem:[%s5 + $0xb0] sm:$0xff]
    %v557 = vld [vmem:[%s5 + $0xb8] sm:$0xff]
    %v558 = vld [vmem:[%s5 + $0xc0] sm:$0xff]
    %v559 = vld [vmem:[%s5 + $0xc8] sm:$0xff]
    %v560 = vld [vmem:[%s5 + $0xd0] sm:$0xff]
    %v561 = vld [vmem:[%s5 + $0xd8] sm:$0xff]
    %v562 = vld [vmem:[%s5 + $0xe0] sm:$0xff]
    %v563 = vld [vmem:[%s5 + $0xe8] sm:$0xff]
    %v564 = vld [vmem:[%s5 + $0xf0] sm:$0xff]
    %v565 = vld [vmem:[%s5 + $0xf8] sm:$0xff]
    %v566 = vld [vmem:[%s5 + $0x100] sm:$0xff]
    %v567 = vld [vmem:[%s5 + $0x108] sm:$0xff]
    %v568 = vld [vmem:[%s5 + $0x110] sm:$0xff]
    %v569 = vld [vmem:[%s5 + $0x118] sm:$0xff]
    %v570 = vld [vmem:[%s5 + $0x120] sm:$0xff]
    %v571 = vld [vmem:[%s5 + $0x128] sm:$0xff]
    %v572 = vld [vmem:[%s5 + $0x130] sm:$0xff]
    %v573 = vld [vmem:[%s5 + $0x138] sm:$0xff]
    %v574 = vld [vmem:[%s5 + $0x140] sm:$0xff]
    %v575 = vld [vmem:[%s5 + $0x148] sm:$0xff]
    %v576 = vld [vmem:[%s5 + $0x150] sm:$0xff]
    %v577 = vld [vmem:[%s5 + $0x158] sm:$0xff]
    %v578 = vld [vmem:[%s5 + $0x160] sm:$0xff]
    %v579 = vld [vmem:[%s5 + $0x168] sm:$0xff]
    %v580 = vld [vmem:[%s5 + $0x170] sm:$0xff]
    %v581 = vld [vmem:[%s5 + $0x178] sm:$0xff]
    %v582 = vld [vmem:[%s5 + $0x180] sm:$0xff]
    %v583 = vld [vmem:[%s5 + $0x188] sm:$0xff]
    %v584 = vld [vmem:[%s5 + $0x190] sm:$0xff]
    %v585 = vld [vmem:[%s5 + $0x198] sm:$0xff]
    %v586 = vld [vmem:[%s5 + $0x1a0] sm:$0xff]
    %v587 = vld [vmem:[%s5 + $0x1a8] sm:$0xff]
    %v588 = vld [vmem:[%s5 + $0x1b0] sm:$0xff]
    %v589 = vld [vmem:[%s5 + $0x1b8] sm:$0xff]
    %v590 = vld [vmem:[%s5 + $0x1c0] sm:$0xff]
    %v591 = vld [vmem:[%s5 + $0x1c8] sm:$0xff]
    %v592 = vld [vmem:[%s5 + $0x1d0] sm:$0xff]
    %v593 = vld [vmem:[%s5 + $0x1d8] sm:$0xff]
    %v594 = vld [vmem:[%s5 + $0x1e0] sm:$0xff]
    %v595 = vld [vmem:[%s5 + $0x1e8] sm:$0xff]
    %v596 = vld [vmem:[%s5 + $0x1f0] sm:$0xff]
    %v597 = vld [vmem:[%s5 + $0x1f8] sm:$0xff]
    %598 = vmatprep.subr.mxu0 0.0
    %599 = vmatpush1.msra.mxu0 %v534
    %600 = vmatprep.subr.mxu0 0.0
    %601 = vmatpush1.msra.mxu0 %v535
    %602 = vmatprep.subr.mxu0 0.0
    %603 = vmatpush1.msra.mxu0 %v536
    %604 = vmatprep.subr.mxu0 0.0
    %605 = vmatpush1.msra.mxu0 %v537
    %606 = vmatprep.subr.mxu0 0.0
    %607 = vmatpush1.msra.mxu0 %v538
    %608 = vmatprep.subr.mxu0 0.0
    %609 = vmatpush1.msra.mxu0 %v539
    %610 = vmatprep.subr.mxu0 0.0
    %611 = vmatpush1.msra.mxu0 %v540
    %612 = vmatprep.subr.mxu0 0.0
    %613 = vmatpush1.msra.mxu0 %v541
    %614 = vmatprep.subr.mxu0 0.0
    %615 = vmatpush1.msra.mxu0 %v542
    %616 = vmatprep.subr.mxu0 0.0
    %617 = vmatpush1.msra.mxu0 %v543
    %618 = vmatprep.subr.mxu0 0.0
    %619 = vmatpush1.msra.mxu0 %v544
    %620 = vmatprep.subr.mxu0 0.0
    %621 = vmatpush1.msra.mxu0 %v545
    %622 = vmatprep.subr.mxu0 0.0
    %623 = vmatpush1.msra.mxu0 %v546
    %624 = vmatprep.subr.mxu0 0.0
    %625 = vmatpush1.msra.mxu0 %v547
    %626 = vmatprep.subr.mxu0 0.0
    %627 = vmatpush1.msra.mxu0 %v548
    %628 = vmatprep.subr.mxu0 0.0
    %629 = vmatpush1.msra.mxu0 %v549
    %630 = vmatprep.subr.mxu0 0.0
    %631 = vmatpush1.msra.mxu0 %v550
    %632 = vmatprep.subr.mxu0 0.0
    %633 = vmatpush1.msra.mxu0 %v551
    %634 = vmatprep.subr.mxu0 0.0
    %635 = vmatpush1.msra.mxu0 %v552
    %636 = vmatprep.subr.mxu0 0.0
    %637 = vmatpush1.msra.mxu0 %v553
    %638 = vmatprep.subr.mxu0 0.0
    %639 = vmatpush1.msra.mxu0 %v554
    %640 = vmatprep.subr.mxu0 0.0
    %641 = vmatpush1.msra.mxu0 %v555
    %642 = vmatprep.subr.mxu0 0.0
    %643 = vmatpush1.msra.mxu0 %v556
    %644 = vmatprep.subr.mxu0 0.0
    %645 = vmatpush1.msra.mxu0 %v557
    %646 = vmatprep.subr.mxu0 0.0
    %647 = vmatpush1.msra.mxu0 %v558
    %648 = vmatprep.subr.mxu0 0.0
    %649 = vmatpush1.msra.mxu0 %v559
    %650 = vmatprep.subr.mxu0 0.0
    %651 = vmatpush1.msra.mxu0 %v560
    %652 = vmatprep.subr.mxu0 0.0
    %653 = vmatpush1.msra.mxu0 %v561
    %654 = vmatprep.subr.mxu0 0.0
    %655 = vmatpush1.msra.mxu0 %v562
    %656 = vmatprep.subr.mxu0 0.0
    %657 = vmatpush1.msra.mxu0 %v563
    %658 = vmatprep.subr.mxu0 0.0
    %659 = vmatpush1.msra.mxu0 %v564
    %660 = vmatprep.subr.mxu0 0.0
    %661 = vmatpush1.msra.mxu0 %v565
    %662 = vmatprep.mubr.f32.mxu0 %v465
    %663 = vmatmul.mubr.f32.gmra.mrb[0].mxu0 %v463
    %v664 = vpop.f32.mrb[0].mxu0
    %v665 = vadd.f32 0.0, %v664
    %v666 = vpop.f32.mrb[0].mxu0
    %667 = vmatprep.mubr.f32.mxu0 %v469
    %668 = vmatmul.mubr.f32.gmra.mrb[0].mxu0 %v467
    %v669 = vpop.f32.mrb[0].mxu0
    %v670 = vadd.f32 0.0, %v669
    %v671 = vpop.f32.mrb[0].mxu0
    %672 = vmatprep.mubr.f32.mxu0 %v475
    %673 = vmatmul.mubr.f32.gmra.mrb[0].mxu0 %v473
    %v674 = vpop.f32.mrb[0].mxu0
    %v675 = vadd.f32 0.0, %v674
    %v676 = vpop.f32.mrb[0].mxu0
    %677 = vmatprep.mubr.f32.mxu0 %v479
    %678 = vmatmul.mubr.f32.gmra.mrb[0].mxu0 %v477
    %v679 = vpop.f32.mrb[0].mxu0
    %v680 = vadd.f32 0.0, %v679
    %v681 = vpop.f32.mrb[0].mxu0
    %682 = vdwg.mxu0
    %683 = vmatprep.subr.mxu0 0.0
    %684 = vmatpush1.msra.mxu0 %v566
    %685 = vmatprep.subr.mxu0 0.0
    %686 = vmatpush1.msra.mxu0 %v567
    %687 = vmatprep.subr.mxu0 0.0
    %688 = vmatpush1.msra.mxu0 %v568
    %689 = vmatprep.subr.mxu0 0.0
    %690 = vmatpush1.msra.mxu0 %v569
    %691 = vmatprep.subr.mxu0 0.0
    %692 = vmatpush1.msra.mxu0 %v570
    %693 = vmatprep.subr.mxu0 0.0
    %694 = vmatpush1.msra.mxu0 %v571
    %695 = vmatprep.subr.mxu0 0.0
    %696 = vmatpush1.msra.mxu0 %v572
    %697 = vmatprep.subr.mxu0 0.0
    %698 = vmatpush1.msra.mxu0 %v573
    %699 = vmatprep.subr.mxu0 0.0
    %700 = vmatpush1.msra.mxu0 %v574
    %701 = vmatprep.subr.mxu0 0.0
    %702 = vmatpush1.msra.mxu0 %v575
    %703 = vmatprep.subr.mxu0 0.0
    %704 = vmatpush1.msra.mxu0 %v576
    %705 = vmatprep.subr.mxu0 0.0
    %706 = vmatpush1.msra.mxu0 %v577
    %707 = vmatprep.subr.mxu0 0.0
    %708 = vmatpush1.msra.mxu0 %v578
    %709 = vmatprep.subr.mxu0 0.0
    %710 = vmatpush1.msra.mxu0 %v579
    %711 = vmatprep.subr.mxu0 0.0
    %712 = vmatpush1.msra.mxu0 %v580
    %713 = vmatprep.subr.mxu0 0.0
    %714 = vmatpush1.msra.mxu0 %v581
    %715 = vmatprep.subr.mxu0 0.0
    %716 = vmatpush1.msra.mxu0 %v582
    %717 = vmatprep.subr.mxu0 0.0
    %718 = vmatpush1.msra.mxu0 %v583
    %719 = vmatprep.subr.mxu0 0.0
    %720 = vmatpush1.msra.mxu0 %v584
    %721 = vmatprep.subr.mxu0 0.0
    %722 = vmatpush1.msra.mxu0 %v585
    %723 = vmatprep.subr.mxu0 0.0
    %724 = vmatpush1.msra.mxu0 %v586
    %725 = vmatprep.subr.mxu0 0.0
    %726 = vmatpush1.msra.mxu0 %v587
    %727 = vmatprep.subr.mxu0 0.0
    %728 = vmatpush1.msra.mxu0 %v588
    %729 = vmatprep.subr.mxu0 0.0
    %730 = vmatpush1.msra.mxu0 %v589
    %731 = vmatprep.subr.mxu0 0.0
    %732 = vmatpush1.msra.mxu0 %v590
    %733 = vmatprep.subr.mxu0 0.0
    %734 = vmatpush1.msra.mxu0 %v591
    %735 = vmatprep.subr.mxu0 0.0
    %736 = vmatpush1.msra.mxu0 %v592
    %737 = vmatprep.subr.mxu0 0.0
    %738 = vmatpush1.msra.mxu0 %v593
    %739 = vmatprep.subr.mxu0 0.0
    %740 = vmatpush1.msra.mxu0 %v594
    %741 = vmatprep.subr.mxu0 0.0
    %742 = vmatpush1.msra.mxu0 %v595
    %743 = vmatprep.subr.mxu0 0.0
    %744 = vmatpush1.msra.mxu0 %v596
    %745 = vmatprep.subr.mxu0 0.0
    %746 = vmatpush1.msra.mxu0 %v597
    %747 = vmatprep.mubr.f32.mxu0 %v518
    %748 = vmatmul.mubr.f32.gmra.mrb[0].mxu0 %v516
    %v749 = vpop.f32.mrb[0].mxu0
    %v750 = vadd.f32 %v665, %v749
    %v751 = vpop.f32.mrb[0].mxu0
    %752 = vmatprep.mubr.f32.mxu0 %v522
    %753 = vmatmul.mubr.f32.gmra.mrb[0].mxu0 %v520
    %v754 = vpop.f32.mrb[0].mxu0
    %v755 = vadd.f32 %v670, %v754
    %v756 = vpop.f32.mrb[0].mxu0
    %757 = vmatprep.mubr.f32.mxu0 %v528
    %758 = vmatmul.mubr.f32.gmra.mrb[0].mxu0 %v526
    %v759 = vpop.f32.mrb[0].mxu0
    %v760 = vadd.f32 %v675, %v759
    %v761 = vpop.f32.mrb[0].mxu0
    %762 = vmatprep.mubr.f32.mxu0 %v532
    %763 = vmatmul.mubr.f32.gmra.mrb[0].mxu0 %v530
    %v764 = vpop.f32.mrb[0].mxu0
    %v765 = vadd.f32 %v680, %v764
    %v766 = vpop.f32.mrb[0].mxu0
    %767 = vdwg.mxu0
    %v768 = vmul.f32 %v463, %v463
    %v769 = vmul.f32 %v465, %v465
    %v770 = vmul.f32 %v516, %v516
    %v771 = vmul.f32 %v518, %v518
    %v772 = vmul.f32 %v467, %v467
    %v773 = vmul.f32 %v469, %v469
    %v774 = vmul.f32 %v520, %v520
    %v775 = vmul.f32 %v522, %v522
    %v776 = vmul.f32 %v473, %v473
    %v777 = vmul.f32 %v475, %v475
    %v778 = vmul.f32 %v526, %v526
    %v779 = vmul.f32 %v528, %v528
    %v780 = vmul.f32 %v477, %v477
    %v781 = vmul.f32 %v479, %v479
    %v782 = vmul.f32 %v530, %v530
    %v783 = vmul.f32 %v532, %v532
    %784 = vmatprep.subr.mxu0 0.0
    %785 = vmatpush1.msra.mxu0 %v534
    %786 = vmatprep.subr.mxu0 0.0
    %787 = vmatpush1.msra.mxu0 %v535
    %788 = vmatprep.subr.mxu0 0.0
    %789 = vmatpush1.msra.mxu0 %v536
    %790 = vmatprep.subr.mxu0 0.0
    %791 = vmatpush1.msra.mxu0 %v537
    %792 = vmatprep.subr.mxu0 0.0
    %793 = vmatpush1.msra.mxu0 %v538
    %794 = vmatprep.subr.mxu0 0.0
    %795 = vmatpush1.msra.mxu0 %v539
    %796 = vmatprep.subr.mxu0 0.0
    %797 = vmatpush1.msra.mxu0 %v540
    %798 = vmatprep.subr.mxu0 0.0
    %799 = vmatpush1.msra.mxu0 %v541
    %800 = vmatprep.subr.mxu0 0.0
    %801 = vmatpush1.msra.mxu0 %v542
    %802 = vmatprep.subr.mxu0 0.0
    %803 = vmatpush1.msra.mxu0 %v543
    %804 = vmatprep.subr.mxu0 0.0
    %805 = vmatpush1.msra.mxu0 %v544
    %806 = vmatprep.subr.mxu0 0.0
    %807 = vmatpush1.msra.mxu0 %v545
    %808 = vmatprep.subr.mxu0 0.0
    %809 = vmatpush1.msra.mxu0 %v546
    %810 = vmatprep.subr.mxu0 0.0
    %811 = vmatpush1.msra.mxu0 %v547
    %812 = vmatprep.subr.mxu0 0.0
    %813 = vmatpush1.msra.mxu0 %v548
    %814 = vmatprep.subr.mxu0 0.0
    %815 = vmatpush1.msra.mxu0 %v549
    %816 = vmatprep.subr.mxu0 0.0
    %817 = vmatpush1.msra.mxu0 %v550
    %818 = vmatprep.subr.mxu0 0.0
    %819 = vmatpush1.msra.mxu0 %v551
    %820 = vmatprep.subr.mxu0 0.0
    %821 = vmatpush1.msra.mxu0 %v552
    %822 = vmatprep.subr.mxu0 0.0
    %823 = vmatpush1.msra.mxu0 %v553
    %824 = vmatprep.subr.mxu0 0.0
    %825 = vmatpush1.msra.mxu0 %v554
    %826 = vmatprep.subr.mxu0 0.0
    %827 = vmatpush1.msra.mxu0 %v555
    %828 = vmatprep.subr.mxu0 0.0
    %829 = vmatpush1.msra.mxu0 %v556
    %830 = vmatprep.subr.mxu0 0.0
    %831 = vmatpush1.msra.mxu0 %v557
    %832 = vmatprep.subr.mxu0 0.0
    %833 = vmatpush1.msra.mxu0 %v558
    %834 = vmatprep.subr.mxu0 0.0
    %835 = vmatpush1.msra.mxu0 %v559
    %836 = vmatprep.subr.mxu0 0.0
    %837 = vmatpush1.msra.mxu0 %v560
    %838 = vmatprep.subr.mxu0 0.0
    %839 = vmatpush1.msra.mxu0 %v561
    %840 = vmatprep.subr.mxu0 0.0
    %841 = vmatpush1.msra.mxu0 %v562
    %842 = vmatprep.subr.mxu0 0.0
    %843 = vmatpush1.msra.mxu0 %v563
    %844 = vmatprep.subr.mxu0 0.0
    %845 = vmatpush1.msra.mxu0 %v564
    %846 = vmatprep.subr.mxu0 0.0
    %847 = vmatpush1.msra.mxu0 %v565
    %848 = vmatprep.mubr.f32.mxu0 %v769
    %849 = vmatmul.mubr.f32.gmra.mrb[0].mxu0 %v768
    %v850 = vpop.f32.mrb[0].mxu0
    %v851 = vadd.f32 0.0, %v850
    %v852 = vpop.f32.mrb[0].mxu0
    %853 = vmatprep.mubr.f32.mxu0 %v773
    %854 = vmatmul.mubr.f32.gmra.mrb[0].mxu0 %v772
    %v855 = vpop.f32.mrb[0].mxu0
    %v856 = vadd.f32 0.0, %v855
    %v857 = vpop.f32.mrb[0].mxu0
    %858 = vmatprep.mubr.f32.mxu0 %v777
    %859 = vmatmul.mubr.f32.gmra.mrb[0].mxu0 %v776
    %v860 = vpop.f32.mrb[0].mxu0
    %v861 = vadd.f32 0.0, %v860
    %v862 = vpop.f32.mrb[0].mxu0
    %863 = vmatprep.mubr.f32.mxu0 %v781
    %864 = vmatmul.mubr.f32.gmra.mrb[0].mxu0 %v780
    %v865 = vpop.f32.mrb[0].mxu0
    %v866 = vadd.f32 0.0, %v865
    %v867 = vpop.f32.mrb[0].mxu0
    %868 = vdwg.mxu0
    %869 = vmatprep.subr.mxu0 0.0
    %870 = vmatpush1.msra.mxu0 %v566
    %871 = vmatprep.subr.mxu0 0.0
    %872 = vmatpush1.msra.mxu0 %v567
    %873 = vmatprep.subr.mxu0 0.0
    %874 = vmatpush1.msra.mxu0 %v568
    %875 = vmatprep.subr.mxu0 0.0
    %876 = vmatpush1.msra.mxu0 %v569
    %877 = vmatprep.subr.mxu0 0.0
    %878 = vmatpush1.msra.mxu0 %v570
    %879 = vmatprep.subr.mxu0 0.0
    %880 = vmatpush1.msra.mxu0 %v571
    %881 = vmatprep.subr.mxu0 0.0
    %882 = vmatpush1.msra.mxu0 %v572
    %883 = vmatprep.subr.mxu0 0.0
    %884 = vmatpush1.msra.mxu0 %v573
    %885 = vmatprep.subr.mxu0 0.0
    %886 = vmatpush1.msra.mxu0 %v574
    %887 = vmatprep.subr.mxu0 0.0
    %888 = vmatpush1.msra.mxu0 %v575
    %889 = vmatprep.subr.mxu0 0.0
    %890 = vmatpush1.msra.mxu0 %v576
    %891 = vmatprep.subr.mxu0 0.0
    %892 = vmatpush1.msra.mxu0 %v577
    %893 = vmatprep.subr.mxu0 0.0
    %894 = vmatpush1.msra.mxu0 %v578
    %895 = vmatprep.subr.mxu0 0.0
    %896 = vmatpush1.msra.mxu0 %v579
    %897 = vmatprep.subr.mxu0 0.0
    %898 = vmatpush1.msra.mxu0 %v580
    %899 = vmatprep.subr.mxu0 0.0
    %900 = vmatpush1.msra.mxu0 %v581
    %901 = vmatprep.subr.mxu0 0.0
    %902 = vmatpush1.msra.mxu0 %v582
    %903 = vmatprep.subr.mxu0 0.0
    %904 = vmatpush1.msra.mxu0 %v583
    %905 = vmatprep.subr.mxu0 0.0
    %906 = vmatpush1.msra.mxu0 %v584
    %907 = vmatprep.subr.mxu0 0.0
    %908 = vmatpush1.msra.mxu0 %v585
    %909 = vmatprep.subr.mxu0 0.0
    %910 = vmatpush1.msra.mxu0 %v586
    %911 = vmatprep.subr.mxu0 0.0
    %912 = vmatpush1.msra.mxu0 %v587
    %913 = vmatprep.subr.mxu0 0.0
    %914 = vmatpush1.msra.mxu0 %v588
    %915 = vmatprep.subr.mxu0 0.0
    %916 = vmatpush1.msra.mxu0 %v589
    %917 = vmatprep.subr.mxu0 0.0
    %918 = vmatpush1.msra.mxu0 %v590
    %919 = vmatprep.subr.mxu0 0.0
    %920 = vmatpush1.msra.mxu0 %v591
    %921 = vmatprep.subr.mxu0 0.0
    %922 = vmatpush1.msra.mxu0 %v592
    %923 = vmatprep.subr.mxu0 0.0
    %924 = vmatpush1.msra.mxu0 %v593
    %925 = vmatprep.subr.mxu0 0.0
    %926 = vmatpush1.msra.mxu0 %v594
    %927 = vmatprep.subr.mxu0 0.0
    %928 = vmatpush1.msra.mxu0 %v595
    %929 = vmatprep.subr.mxu0 0.0
    %930 = vmatpush1.msra.mxu0 %v596
    %931 = vmatprep.subr.mxu0 0.0
    %932 = vmatpush1.msra.mxu0 %v597
    %933 = vmatprep.mubr.f32.mxu0 %v771
    %934 = vmatmul.mubr.f32.gmra.mrb[0].mxu0 %v770
    %v935 = vpop.f32.mrb[0].mxu0
    %v936 = vadd.f32 %v851, %v935
    %v937 = vpop.f32.mrb[0].mxu0
    %938 = vmatprep.mubr.f32.mxu0 %v775
    %939 = vmatmul.mubr.f32.gmra.mrb[0].mxu0 %v774
    %v940 = vpop.f32.mrb[0].mxu0
    %v941 = vadd.f32 %v856, %v940
    %v942 = vpop.f32.mrb[0].mxu0
    %943 = vmatprep.mubr.f32.mxu0 %v779
    %944 = vmatmul.mubr.f32.gmra.mrb[0].mxu0 %v778
    %v945 = vpop.f32.mrb[0].mxu0
    %v946 = vadd.f32 %v861, %v945
    %v947 = vpop.f32.mrb[0].mxu0
    %948 = vmatprep.mubr.f32.mxu0 %v783
    %949 = vmatmul.mubr.f32.gmra.mrb[0].mxu0 %v782
    %v950 = vpop.f32.mrb[0].mxu0
    %v951 = vadd.f32 %v866, %v950
    %v952 = vpop.f32.mrb[0].mxu0
    %953 = vdwg.mxu0
    %v954 = vld [vmem:[%s7] sm:$0x3]
    %vm955 = vcmask 261120
    %v957 = vsel %vm955, %v954, 0
    %959 = vmatprep.subr.mxu0 0.0
    %960 = vmatpush1.msra.mxu0 %v750
    %961 = vmatprep.subr.mxu0 0.0
    %962 = vmatpush1.msra.mxu0 %v755
    %963 = vmatprep.subr.mxu0 0.0
    %964 = vmatpush1.msra.mxu0 %v760
    %965 = vmatprep.subr.mxu0 0.0
    %966 = vmatpush1.msra.mxu0 %v765
    %967 = vmatprep.subr.mxu0 0.0
    %968 = vmatpush1.msra.mxu0 0.0
    %969 = vmatprep.subr.mxu0 0.0
    %970 = vmatpush1.msra.mxu0 0.0
    %971 = vmatprep.subr.mxu0 0.0
    %972 = vmatpush1.msra.mxu0 0.0
    %973 = vmatprep.subr.mxu0 0.0
    %974 = vmatpush1.msra.mxu0 0.0
    %975 = vmatprep.subr.mxu0 0.0
    %976 = vmatpush1.msra.mxu0 0.0
    %977 = vmatprep.subr.mxu0 0.0
    %978 = vmatpush1.msra.mxu0 0.0
    %979 = vmatprep.subr.mxu0 0.0
    %980 = vmatpush1.msra.mxu0 0.0
    %981 = vmatprep.subr.mxu0 0.0
    %982 = vmatpush1.msra.mxu0 0.0
    %983 = vmatprep.subr.mxu0 0.0
    %984 = vmatpush1.msra.mxu0 0.0
    %985 = vmatprep.subr.mxu0 0.0
    %986 = vmatpush1.msra.mxu0 0.0
    %987 = vmatprep.subr.mxu0 0.0
    %988 = vmatpush1.msra.mxu0 0.0
    %989 = vmatprep.subr.mxu0 0.0
    %990 = vmatpush1.msra.mxu0 0.0
    %991 = vmatprep.subr.mxu0 0.0
    %992 = vmatpush1.msra.mxu0 0.0
    %993 = vmatprep.subr.mxu0 0.0
    %994 = vmatpush1.msra.mxu0 0.0
    %995 = vmatprep.subr.mxu0 0.0
    %996 = vmatpush1.msra.mxu0 0.0
    %997 = vmatprep.subr.mxu0 0.0
    %998 = vmatpush1.msra.mxu0 0.0
    %999 = vmatprep.subr.mxu0 0.0
    %1000 = vmatpush1.msra.mxu0 0.0
    %1001 = vmatprep.subr.mxu0 0.0
    %1002 = vmatpush1.msra.mxu0 0.0
    %1003 = vmatprep.subr.mxu0 0.0
    %1004 = vmatpush1.msra.mxu0 0.0
    %1005 = vmatprep.subr.mxu0 0.0
    %1006 = vmatpush1.msra.mxu0 0.0
    %1007 = vmatprep.subr.mxu0 0.0
    %1008 = vmatpush1.msra.mxu0 0.0
    %1009 = vmatprep.subr.mxu0 0.0
    %1010 = vmatpush1.msra.mxu0 0.0
    %1011 = vmatprep.subr.mxu0 0.0
    %1012 = vmatpush1.msra.mxu0 0.0
    %1013 = vmatprep.subr.mxu0 0.0
    %1014 = vmatpush1.msra.mxu0 0.0
    %1015 = vmatprep.subr.mxu0 0.0
    %1016 = vmatpush1.msra.mxu0 0.0
    %1017 = vmatprep.subr.mxu0 0.0
    %1018 = vmatpush1.msra.mxu0 0.0
    %1019 = vmatprep.subr.mxu0 0.0
    %1020 = vmatpush1.msra.mxu0 0.0
    %1021 = vmatprep.subr.mxu0 0.0
    %1022 = vmatpush1.msra.mxu0 0.0
    %1023 = vmatprep.mubr.f32.mxu0 0.0
    %1024 = vmatmul.mubr.f32.gmra.mrb[0].mxu0 %v957
    %v1025 = vpop.f32.mrb[0].mxu0
    %v1026 = vadd.f32 0.0, %v1025
    %v1027 = vpop.f32.mrb[0].mxu0
    %1028 = vdwg.mxu0
    %1029 = vmatprep.subr.mxu0 0.0
    %1030 = vmatpush1.msra.mxu0 %v936
    %1031 = vmatprep.subr.mxu0 0.0
    %1032 = vmatpush1.msra.mxu0 %v941
    %1033 = vmatprep.subr.mxu0 0.0
    %1034 = vmatpush1.msra.mxu0 %v946
    %1035 = vmatprep.subr.mxu0 0.0
    %1036 = vmatpush1.msra.mxu0 %v951
    %1037 = vmatprep.subr.mxu0 0.0
    %1038 = vmatpush1.msra.mxu0 0.0
    %1039 = vmatprep.subr.mxu0 0.0
    %1040 = vmatpush1.msra.mxu0 0.0
    %1041 = vmatprep.subr.mxu0 0.0
    %1042 = vmatpush1.msra.mxu0 0.0
    %1043 = vmatprep.subr.mxu0 0.0
    %1044 = vmatpush1.msra.mxu0 0.0
    %1045 = vmatprep.subr.mxu0 0.0
    %1046 = vmatpush1.msra.mxu0 0.0
    %1047 = vmatprep.subr.mxu0 0.0
    %1048 = vmatpush1.msra.mxu0 0.0
    %1049 = vmatprep.subr.mxu0 0.0
    %1050 = vmatpush1.msra.mxu0 0.0
    %1051 = vmatprep.subr.mxu0 0.0
    %1052 = vmatpush1.msra.mxu0 0.0
    %1053 = vmatprep.subr.mxu0 0.0
    %1054 = vmatpush1.msra.mxu0 0.0
    %1055 = vmatprep.subr.mxu0 0.0
    %1056 = vmatpush1.msra.mxu0 0.0
    %1057 = vmatprep.subr.mxu0 0.0
    %1058 = vmatpush1.msra.mxu0 0.0
    %1059 = vmatprep.subr.mxu0 0.0
    %1060 = vmatpush1.msra.mxu0 0.0
    %1061 = vmatprep.subr.mxu0 0.0
    %1062 = vmatpush1.msra.mxu0 0.0
    %1063 = vmatprep.subr.mxu0 0.0
    %1064 = vmatpush1.msra.mxu0 0.0
    %1065 = vmatprep.subr.mxu0 0.0
    %1066 = vmatpush1.msra.mxu0 0.0
    %1067 = vmatprep.subr.mxu0 0.0
    %1068 = vmatpush1.msra.mxu0 0.0
    %1069 = vmatprep.subr.mxu0 0.0
    %1070 = vmatpush1.msra.mxu0 0.0
    %1071 = vmatprep.subr.mxu0 0.0
    %1072 = vmatpush1.msra.mxu0 0.0
    %1073 = vmatprep.subr.mxu0 0.0
    %1074 = vmatpush1.msra.mxu0 0.0
    %1075 = vmatprep.subr.mxu0 0.0
    %1076 = vmatpush1.msra.mxu0 0.0
    %1077 = vmatprep.subr.mxu0 0.0
    %1078 = vmatpush1.msra.mxu0 0.0
    %1079 = vmatprep.subr.mxu0 0.0
    %1080 = vmatpush1.msra.mxu0 0.0
    %1081 = vmatprep.subr.mxu0 0.0
    %1082 = vmatpush1.msra.mxu0 0.0
    %1083 = vmatprep.subr.mxu0 0.0
    %1084 = vmatpush1.msra.mxu0 0.0
    %1085 = vmatprep.subr.mxu0 0.0
    %1086 = vmatpush1.msra.mxu0 0.0
    %1087 = vmatprep.subr.mxu0 0.0
    %1088 = vmatpush1.msra.mxu0 0.0
    %1089 = vmatprep.subr.mxu0 0.0
    %1090 = vmatpush1.msra.mxu0 0.0
    %1091 = vmatprep.subr.mxu0 0.0
    %1092 = vmatpush1.msra.mxu0 0.0
    %1093 = vmatprep.mubr.f32.mxu0 0.0
    %1094 = vmatmul.mubr.f32.gmra.mrb[0].mxu0 %v957
    %v1095 = vpop.f32.mrb[0].mxu0
    %v1096 = vadd.f32 0.0, %v1095
    %v1097 = vpop.f32.mrb[0].mxu0
    %1098 = vdwg.mxu0
    %v1099 = vld [vmem:[%s6] sm:$0xff]
    %v1100 = vld [vmem:[%s6 + $0x8] sm:$0xff]
    %v1101 = vld [vmem:[%s6 + $0x10] sm:$0xff]
    %v1102 = vld [vmem:[%s6 + $0x18] sm:$0xff]
    %vm1103 = vcmask 64512
    %v1105 = vsel %vm1103, %v1026, 0
    %1107 = vmatprep.subr.mxu0 %v1100
    %1108 = vmatpush1.msra.mxu0 %v1099
    %1109 = vmatprep.subr.mxu0 0.0
    %1110 = vmatpush1.msra.mxu0 0.0
    %1111 = vmatprep.subr.mxu0 0.0
    %1112 = vmatpush1.msra.mxu0 0.0
    %1113 = vmatprep.subr.mxu0 0.0
    %1114 = vmatpush1.msra.mxu0 0.0
    %1115 = vmatprep.subr.mxu0 0.0
    %1116 = vmatpush1.msra.mxu0 0.0
    %1117 = vmatprep.subr.mxu0 0.0
    %1118 = vmatpush1.msra.mxu0 0.0
    %1119 = vmatprep.subr.mxu0 0.0
    %1120 = vmatpush1.msra.mxu0 0.0
    %1121 = vmatprep.subr.mxu0 0.0
    %1122 = vmatpush1.msra.mxu0 0.0
    %1123 = vmatprep.subr.mxu0 0.0
    %1124 = vmatpush1.msra.mxu0 0.0
    %1125 = vmatprep.subr.mxu0 0.0
    %1126 = vmatpush1.msra.mxu0 0.0
    %1127 = vmatprep.subr.mxu0 0.0
    %1128 = vmatpush1.msra.mxu0 0.0
    %1129 = vmatprep.subr.mxu0 0.0
    %1130 = vmatpush1.msra.mxu0 0.0
    %1131 = vmatprep.subr.mxu0 0.0
    %1132 = vmatpush1.msra.mxu0 0.0
    %1133 = vmatprep.subr.mxu0 0.0
    %1134 = vmatpush1.msra.mxu0 0.0
    %1135 = vmatprep.subr.mxu0 0.0
    %1136 = vmatpush1.msra.mxu0 0.0
    %1137 = vmatprep.subr.mxu0 0.0
    %1138 = vmatpush1.msra.mxu0 0.0
    %1139 = vmatprep.subr.mxu0 0.0
    %1140 = vmatpush1.msra.mxu0 0.0
    %1141 = vmatprep.subr.mxu0 0.0
    %1142 = vmatpush1.msra.mxu0 0.0
    %1143 = vmatprep.subr.mxu0 0.0
    %1144 = vmatpush1.msra.mxu0 0.0
    %1145 = vmatprep.subr.mxu0 0.0
    %1146 = vmatpush1.msra.mxu0 0.0
    %1147 = vmatprep.subr.mxu0 0.0
    %1148 = vmatpush1.msra.mxu0 0.0
    %1149 = vmatprep.subr.mxu0 0.0
    %1150 = vmatpush1.msra.mxu0 0.0
    %1151 = vmatprep.subr.mxu0 0.0
    %1152 = vmatpush1.msra.mxu0 0.0
    %1153 = vmatprep.subr.mxu0 0.0
    %1154 = vmatpush1.msra.mxu0 0.0
    %1155 = vmatprep.subr.mxu0 0.0
    %1156 = vmatpush1.msra.mxu0 0.0
    %1157 = vmatprep.subr.mxu0 0.0
    %1158 = vmatpush1.msra.mxu0 0.0
    %1159 = vmatprep.subr.mxu0 0.0
    %1160 = vmatpush1.msra.mxu0 0.0
    %1161 = vmatprep.subr.mxu0 0.0
    %1162 = vmatpush1.msra.mxu0 0.0
    %1163 = vmatprep.subr.mxu0 0.0
    %1164 = vmatpush1.msra.mxu0 0.0
    %1165 = vmatprep.subr.mxu0 0.0
    %1166 = vmatpush1.msra.mxu0 0.0
    %1167 = vmatprep.subr.mxu0 0.0
    %1168 = vmatpush1.msra.mxu0 0.0
    %1169 = vmatprep.subr.mxu0 0.0
    %1170 = vmatpush1.msra.mxu0 0.0
    %1171 = vmatprep.mubr.f32.mxu0 0.0
    %1172 = vmatmul.mubr.f32.gmra.mrb[0].mxu0 %v1105
    %v1173 = vpop.f32.mrb[0].mxu0
    %v1174 = vadd.f32 0.0, %v1173
    %v1175 = vpop.f32.mrb[0].mxu0
    %v1176 = vadd.f32 0.0, %v1175
    %1177 = vdwg.mxu0
    %1178 = vmatprep.subr.mxu0 %v1102
    %1179 = vmatpush1.msra.mxu0 %v1101
    %1180 = vmatprep.subr.mxu0 0.0
    %1181 = vmatpush1.msra.mxu0 0.0
    %1182 = vmatprep.subr.mxu0 0.0
    %1183 = vmatpush1.msra.mxu0 0.0
    %1184 = vmatprep.subr.mxu0 0.0
    %1185 = vmatpush1.msra.mxu0 0.0
    %1186 = vmatprep.subr.mxu0 0.0
    %1187 = vmatpush1.msra.mxu0 0.0
    %1188 = vmatprep.subr.mxu0 0.0
    %1189 = vmatpush1.msra.mxu0 0.0
    %1190 = vmatprep.subr.mxu0 0.0
    %1191 = vmatpush1.msra.mxu0 0.0
    %1192 = vmatprep.subr.mxu0 0.0
    %1193 = vmatpush1.msra.mxu0 0.0
    %1194 = vmatprep.subr.mxu0 0.0
    %1195 = vmatpush1.msra.mxu0 0.0
    %1196 = vmatprep.subr.mxu0 0.0
    %1197 = vmatpush1.msra.mxu0 0.0
    %1198 = vmatprep.subr.mxu0 0.0
    %1199 = vmatpush1.msra.mxu0 0.0
    %1200 = vmatprep.subr.mxu0 0.0
    %1201 = vmatpush1.msra.mxu0 0.0
    %1202 = vmatprep.subr.mxu0 0.0
    %1203 = vmatpush1.msra.mxu0 0.0
    %1204 = vmatprep.subr.mxu0 0.0
    %1205 = vmatpush1.msra.mxu0 0.0
    %1206 = vmatprep.subr.mxu0 0.0
    %1207 = vmatpush1.msra.mxu0 0.0
    %1208 = vmatprep.subr.mxu0 0.0
    %1209 = vmatpush1.msra.mxu0 0.0
    %1210 = vmatprep.subr.mxu0 0.0
    %1211 = vmatpush1.msra.mxu0 0.0
    %1212 = vmatprep.subr.mxu0 0.0
    %1213 = vmatpush1.msra.mxu0 0.0
    %1214 = vmatprep.subr.mxu0 0.0
    %1215 = vmatpush1.msra.mxu0 0.0
    %1216 = vmatprep.subr.mxu0 0.0
    %1217 = vmatpush1.msra.mxu0 0.0
    %1218 = vmatprep.subr.mxu0 0.0
    %1219 = vmatpush1.msra.mxu0 0.0
    %1220 = vmatprep.subr.mxu0 0.0
    %1221 = vmatpush1.msra.mxu0 0.0
    %1222 = vmatprep.subr.mxu0 0.0
    %1223 = vmatpush1.msra.mxu0 0.0
    %1224 = vmatprep.subr.mxu0 0.0
    %1225 = vmatpush1.msra.mxu0 0.0
    %1226 = vmatprep.subr.mxu0 0.0
    %1227 = vmatpush1.msra.mxu0 0.0
    %1228 = vmatprep.subr.mxu0 0.0
    %1229 = vmatpush1.msra.mxu0 0.0
    %1230 = vmatprep.subr.mxu0 0.0
    %1231 = vmatpush1.msra.mxu0 0.0
    %1232 = vmatprep.subr.mxu0 0.0
    %1233 = vmatpush1.msra.mxu0 0.0
    %1234 = vmatprep.subr.mxu0 0.0
    %1235 = vmatpush1.msra.mxu0 0.0
    %1236 = vmatprep.subr.mxu0 0.0
    %1237 = vmatpush1.msra.mxu0 0.0
    %1238 = vmatprep.subr.mxu0 0.0
    %1239 = vmatpush1.msra.mxu0 0.0
    %1240 = vmatprep.subr.mxu0 0.0
    %1241 = vmatpush1.msra.mxu0 0.0
    %1242 = vmatprep.mubr.f32.mxu0 0.0
    %1243 = vmatmul.mubr.f32.gmra.mrb[0].mxu0 %v1105
    %v1244 = vpop.f32.mrb[0].mxu0
    %v1245 = vadd.f32 0.0, %v1244
    %v1246 = vpop.f32.mrb[0].mxu0
    %v1247 = vadd.f32 0.0, %v1246
    %1248 = vdwg.mxu0
    %v1250 = vsel %vm1103, %v1096, 0
    %1252 = vmatprep.subr.mxu0 %v1100
    %1253 = vmatpush1.msra.mxu0 %v1099
    %1254 = vmatprep.subr.mxu0 0.0
    %1255 = vmatpush1.msra.mxu0 0.0
    %1256 = vmatprep.subr.mxu0 0.0
    %1257 = vmatpush1.msra.mxu0 0.0
    %1258 = vmatprep.subr.mxu0 0.0
    %1259 = vmatpush1.msra.mxu0 0.0
    %1260 = vmatprep.subr.mxu0 0.0
    %1261 = vmatpush1.msra.mxu0 0.0
    %1262 = vmatprep.subr.mxu0 0.0
    %1263 = vmatpush1.msra.mxu0 0.0
    %1264 = vmatprep.subr.mxu0 0.0
    %1265 = vmatpush1.msra.mxu0 0.0
    %1266 = vmatprep.subr.mxu0 0.0
    %1267 = vmatpush1.msra.mxu0 0.0
    %1268 = vmatprep.subr.mxu0 0.0
    %1269 = vmatpush1.msra.mxu0 0.0
    %1270 = vmatprep.subr.mxu0 0.0
    %1271 = vmatpush1.msra.mxu0 0.0
    %1272 = vmatprep.subr.mxu0 0.0
    %1273 = vmatpush1.msra.mxu0 0.0
    %1274 = vmatprep.subr.mxu0 0.0
    %1275 = vmatpush1.msra.mxu0 0.0
    %1276 = vmatprep.subr.mxu0 0.0
    %1277 = vmatpush1.msra.mxu0 0.0
    %1278 = vmatprep.subr.mxu0 0.0
    %1279 = vmatpush1.msra.mxu0 0.0
    %1280 = vmatprep.subr.mxu0 0.0
    %1281 = vmatpush1.msra.mxu0 0.0
    %1282 = vmatprep.subr.mxu0 0.0
    %1283 = vmatpush1.msra.mxu0 0.0
    %1284 = vmatprep.subr.mxu0 0.0
    %1285 = vmatpush1.msra.mxu0 0.0
    %1286 = vmatprep.subr.mxu0 0.0
    %1287 = vmatpush1.msra.mxu0 0.0
    %1288 = vmatprep.subr.mxu0 0.0
    %1289 = vmatpush1.msra.mxu0 0.0
    %1290 = vmatprep.subr.mxu0 0.0
    %1291 = vmatpush1.msra.mxu0 0.0
    %1292 = vmatprep.subr.mxu0 0.0
    %1293 = vmatpush1.msra.mxu0 0.0
    %1294 = vmatprep.subr.mxu0 0.0
    %1295 = vmatpush1.msra.mxu0 0.0
    %1296 = vmatprep.subr.mxu0 0.0
    %1297 = vmatpush1.msra.mxu0 0.0
    %1298 = vmatprep.subr.mxu0 0.0
    %1299 = vmatpush1.msra.mxu0 0.0
    %1300 = vmatprep.subr.mxu0 0.0
    %1301 = vmatpush1.msra.mxu0 0.0
    %1302 = vmatprep.subr.mxu0 0.0
    %1303 = vmatpush1.msra.mxu0 0.0
    %1304 = vmatprep.subr.mxu0 0.0
    %1305 = vmatpush1.msra.mxu0 0.0
    %1306 = vmatprep.subr.mxu0 0.0
    %1307 = vmatpush1.msra.mxu0 0.0
    %1308 = vmatprep.subr.mxu0 0.0
    %1309 = vmatpush1.msra.mxu0 0.0
    %1310 = vmatprep.subr.mxu0 0.0
    %1311 = vmatpush1.msra.mxu0 0.0
    %1312 = vmatprep.subr.mxu0 0.0
    %1313 = vmatpush1.msra.mxu0 0.0
    %1314 = vmatprep.subr.mxu0 0.0
    %1315 = vmatpush1.msra.mxu0 0.0
    %1316 = vmatprep.mubr.f32.mxu0 0.0
    %1317 = vmatmul.mubr.f32.gmra.mrb[0].mxu0 %v1250
    %v1318 = vpop.f32.mrb[0].mxu0
    %v1319 = vadd.f32 0.0, %v1318
    %v1320 = vpop.f32.mrb[0].mxu0
    %v1321 = vadd.f32 0.0, %v1320
    %1322 = vdwg.mxu0
    %1323 = vmatprep.subr.mxu0 %v1102
    %1324 = vmatpush1.msra.mxu0 %v1101
    %1325 = vmatprep.subr.mxu0 0.0
    %1326 = vmatpush1.msra.mxu0 0.0
    %1327 = vmatprep.subr.mxu0 0.0
    %1328 = vmatpush1.msra.mxu0 0.0
    %1329 = vmatprep.subr.mxu0 0.0
    %1330 = vmatpush1.msra.mxu0 0.0
    %1331 = vmatprep.subr.mxu0 0.0
    %1332 = vmatpush1.msra.mxu0 0.0
    %1333 = vmatprep.subr.mxu0 0.0
    %1334 = vmatpush1.msra.mxu0 0.0
    %1335 = vmatprep.subr.mxu0 0.0
    %1336 = vmatpush1.msra.mxu0 0.0
    %1337 = vmatprep.subr.mxu0 0.0
    %1338 = vmatpush1.msra.mxu0 0.0
    %1339 = vmatprep.subr.mxu0 0.0
    %1340 = vmatpush1.msra.mxu0 0.0
    %1341 = vmatprep.subr.mxu0 0.0
    %1342 = vmatpush1.msra.mxu0 0.0
    %1343 = vmatprep.subr.mxu0 0.0
    %1344 = vmatpush1.msra.mxu0 0.0
    %1345 = vmatprep.subr.mxu0 0.0
    %1346 = vmatpush1.msra.mxu0 0.0
    %1347 = vmatprep.subr.mxu0 0.0
    %1348 = vmatpush1.msra.mxu0 0.0
    %1349 = vmatprep.subr.mxu0 0.0
    %1350 = vmatpush1.msra.mxu0 0.0
    %1351 = vmatprep.subr.mxu0 0.0
    %1352 = vmatpush1.msra.mxu0 0.0
    %1353 = vmatprep.subr.mxu0 0.0
    %1354 = vmatpush1.msra.mxu0 0.0
    %1355 = vmatprep.subr.mxu0 0.0
    %1356 = vmatpush1.msra.mxu0 0.0
    %1357 = vmatprep.subr.mxu0 0.0
    %1358 = vmatpush1.msra.mxu0 0.0
    %1359 = vmatprep.subr.mxu0 0.0
    %1360 = vmatpush1.msra.mxu0 0.0
    %1361 = vmatprep.subr.mxu0 0.0
    %1362 = vmatpush1.msra.mxu0 0.0
    %1363 = vmatprep.subr.mxu0 0.0
    %1364 = vmatpush1.msra.mxu0 0.0
    %1365 = vmatprep.subr.mxu0 0.0
    %1366 = vmatpush1.msra.mxu0 0.0
    %1367 = vmatprep.subr.mxu0 0.0
    %1368 = vmatpush1.msra.mxu0 0.0
    %1369 = vmatprep.subr.mxu0 0.0
    %1370 = vmatpush1.msra.mxu0 0.0
    %1371 = vmatprep.subr.mxu0 0.0
    %1372 = vmatpush1.msra.mxu0 0.0
    %1373 = vmatprep.subr.mxu0 0.0
    %1374 = vmatpush1.msra.mxu0 0.0
    %1375 = vmatprep.subr.mxu0 0.0
    %1376 = vmatpush1.msra.mxu0 0.0
    %1377 = vmatprep.subr.mxu0 0.0
    %1378 = vmatpush1.msra.mxu0 0.0
    %1379 = vmatprep.subr.mxu0 0.0
    %1380 = vmatpush1.msra.mxu0 0.0
    %1381 = vmatprep.subr.mxu0 0.0
    %1382 = vmatpush1.msra.mxu0 0.0
    %1383 = vmatprep.subr.mxu0 0.0
    %1384 = vmatpush1.msra.mxu0 0.0
    %1385 = vmatprep.subr.mxu0 0.0
    %1386 = vmatpush1.msra.mxu0 0.0
    %1387 = vmatprep.mubr.f32.mxu0 0.0
    %1388 = vmatmul.mubr.f32.gmra.mrb[0].mxu0 %v1250
    %v1389 = vpop.f32.mrb[0].mxu0
    %v1390 = vadd.f32 0.0, %v1389
    %v1391 = vpop.f32.mrb[0].mxu0
    %v1392 = vadd.f32 0.0, %v1391
    %1393 = vdwg.mxu0
    %v1394 = vmul.f32 %v1174, %v1174
    %v1395 = vmul.f32 %v1176, %v1176
    %v1396 = vmul.f32 %v1245, %v1245
    %v1397 = vmul.f32 %v1247, %v1247
    %v1398 = vsub.f32 %v1319, %v1394
    %v1399 = vsub.f32 %v1321, %v1395
    %v1400 = vsub.f32 %v1390, %v1396
    %v1401 = vsub.f32 %v1392, %v1397
    %v1402 = vadd.f32 %v1398, 1e-05
    %v1403 = vadd.f32 %v1399, 1e-05
    %v1404 = vadd.f32 %v1400, 1e-05
    %v1405 = vadd.f32 %v1401, 1e-05
    %v1406 = vrsqrt.pop %v1402
    %v1407 = vrsqrt.pop %v1403
    %v1408 = vrsqrt.pop %v1404
    %v1409 = vrsqrt.pop %v1405
    %v1410 = vld [vmem:[%s3] sm:$0xf]
    %v1412 = vlaneseq
    %v1413 = vshrl.u32 %v1412, 7
    %v1414 = vsub.s32 0, %v1413
    %v1415 = vrot.slane %v1410, %v1414
    %v1416 = vlaneseq
    %v1417 = vshrl.u32 %v1416, 7
    %v1418 = vsub.s32 1, %v1417
    %v1419 = vrot.slane %v1410, %v1418
    %v1420 = vlaneseq
    %v1421 = vshrl.u32 %v1420, 7
    %v1422 = vsub.s32 2, %v1421
    %v1423 = vrot.slane %v1410, %v1422
    %v1424 = vlaneseq
    %v1425 = vshrl.u32 %v1424, 7
    %v1426 = vsub.s32 3, %v1425
    %v1427 = vrot.slane %v1410, %v1426
    %v1432 = vmul.f32 %v1415, %v1406
    %v1433 = vmul.f32 %v1419, %v1407
    %v1434 = vmul.f32 %v1423, %v1408
    %v1435 = vmul.f32 %v1427, %v1409
    %v1436 = vld [vmem:[%s4] sm:$0xf]
    %v1437 = vmul.f32 %v1174, %v1432
    %v1438 = vmul.f32 %v1176, %v1433
    %v1439 = vmul.f32 %v1245, %v1434
    %v1440 = vmul.f32 %v1247, %v1435
    %v1442 = vlaneseq
    %v1443 = vshrl.u32 %v1442, 7
    %v1444 = vsub.s32 0, %v1443
    %v1445 = vrot.slane %v1436, %v1444
    %v1446 = vlaneseq
    %v1447 = vshrl.u32 %v1446, 7
    %v1448 = vsub.s32 1, %v1447
    %v1449 = vrot.slane %v1436, %v1448
    %v1450 = vlaneseq
    %v1451 = vshrl.u32 %v1450, 7
    %v1452 = vsub.s32 2, %v1451
    %v1453 = vrot.slane %v1436, %v1452
    %v1454 = vlaneseq
    %v1455 = vshrl.u32 %v1454, 7
    %v1456 = vsub.s32 3, %v1455
    %v1457 = vrot.slane %v1436, %v1456
    %v1462 = vsub.f32 %v1445, %v1437
    %v1463 = vsub.f32 %v1449, %v1438
    %v1464 = vsub.f32 %v1453, %v1439
    %v1465 = vsub.f32 %v1457, %v1440
    %v1466 = vld [vmem:[%s9] sm:$0xff]
    %v1467 = vadd.f32 %v1466, 1.0
    %v1469 = vcombine.high %v1467, %v1467
    %v1471 = vunpack.c.l.s4 1983009808
    %v1472 = vunpack.c.0.s8 %v1471
    %v1473 = vlaneseq
    %v1474 = vshrl.u32 %v1473, 7
    %v1475 = vsub.s32 %v1472, %v1474
    %v1476 = vrot.slane %v1467, %v1475
    %v1478 = vunpack.c.l.s4 1983009808
    %v1479 = vunpack.c.0.s8 %v1478
    %v1480 = vlaneseq
    %v1481 = vshrl.u32 %v1480, 7
    %v1482 = vsub.s32 %v1479, %v1481
    %v1483 = vrot.slane %v1469, %v1482
    %v1484 = vcombine.high %v1476, %v1476
    %v1485 = vcombine.high %v1483, %v1483
    %v1490 = vmul.f32 %v1432, %v1476
    %v1491 = vmul.f32 %v1433, %v1484
    %v1492 = vmul.f32 %v1434, %v1483
    %v1493 = vmul.f32 %v1435, %v1485
    %v1494 = vmul.f32 %v1462, %v1476
    %v1495 = vmul.f32 %v1463, %v1484
    %v1496 = vmul.f32 %v1464, %v1483
    %v1497 = vmul.f32 %v1465, %v1485
    %v1498 = vld [vmem:[%s10] sm:$0xff]
    %v1500 = vcombine.high %v1498, %v1498
    %v1502 = vunpack.c.l.s4 1983009808
    %v1503 = vunpack.c.0.s8 %v1502
    %v1504 = vlaneseq
    %v1505 = vshrl.u32 %v1504, 7
    %v1506 = vsub.s32 %v1503, %v1505
    %v1507 = vrot.slane %v1498, %v1506
    %v1509 = vunpack.c.l.s4 1983009808
    %v1510 = vunpack.c.0.s8 %v1509
    %v1511 = vlaneseq
    %v1512 = vshrl.u32 %v1511, 7
    %v1513 = vsub.s32 %v1510, %v1512
    %v1514 = vrot.slane %v1500, %v1513
    %v1515 = vcombine.high %v1507, %v1507
    %v1516 = vcombine.high %v1514, %v1514
    %v1521 = vadd.f32 %v1494, %v1507
    %v1522 = vadd.f32 %v1495, %v1515
    %v1523 = vadd.f32 %v1496, %v1514
    %v1524 = vadd.f32 %v1497, %v1516
    %v1525 = vld [vmem:[%s8] sm:$0xff]
    %v1526 = vld [vmem:[%s8 + $0x8] sm:$0xff]
    %v1527 = vld [vmem:[%s8 + $0x10] sm:$0xff]
    %v1528 = vld [vmem:[%s8 + $0x18] sm:$0xff]
    %vm1529 = vcmask 15360
    %v1531 = vsel %vm1529, %v1525, 0
    %v1534 = vsel %vm1529, %v1526, 0
    %v1537 = vsel %vm1529, %v1527, 0
    %v1540 = vsel %vm1529, %v1528, 0
    %vm1542 = vcmask 1041408
    %v1544 = vsel %vm1542, %v1490, 0
    %v1547 = vsel %vm1542, %v1491, 0
    %v1550 = vsel %vm1542, %v1492, 0
    %v1553 = vsel %vm1542, %v1493, 0
    %1555 = vmatprep.subr.mxu0 %v1547
    %1556 = vmatpush1.msra.mxu0 %v1544
    %1557 = vmatprep.subr.mxu0 0.0
    %1558 = vmatpush1.msra.mxu0 0.0
    %1559 = vmatprep.subr.mxu0 0.0
    %1560 = vmatpush1.msra.mxu0 0.0
    %1561 = vmatprep.subr.mxu0 0.0
    %1562 = vmatpush1.msra.mxu0 0.0
    %1563 = vmatprep.subr.mxu0 0.0
    %1564 = vmatpush1.msra.mxu0 0.0
    %1565 = vmatprep.subr.mxu0 0.0
    %1566 = vmatpush1.msra.mxu0 0.0
    %1567 = vmatprep.subr.mxu0 0.0
    %1568 = vmatpush1.msra.mxu0 0.0
    %1569 = vmatprep.subr.mxu0 0.0
    %1570 = vmatpush1.msra.mxu0 0.0
    %1571 = vmatprep.subr.mxu0 0.0
    %1572 = vmatpush1.msra.mxu0 0.0
    %1573 = vmatprep.subr.mxu0 0.0
    %1574 = vmatpush1.msra.mxu0 0.0
    %1575 = vmatprep.subr.mxu0 0.0
    %1576 = vmatpush1.msra.mxu0 0.0
    %1577 = vmatprep.subr.mxu0 0.0
    %1578 = vmatpush1.msra.mxu0 0.0
    %1579 = vmatprep.subr.mxu0 0.0
    %1580 = vmatpush1.msra.mxu0 0.0
    %1581 = vmatprep.subr.mxu0 0.0
    %1582 = vmatpush1.msra.mxu0 0.0
    %1583 = vmatprep.subr.mxu0 0.0
    %1584 = vmatpush1.msra.mxu0 0.0
    %1585 = vmatprep.subr.mxu0 0.0
    %1586 = vmatpush1.msra.mxu0 0.0
    %1587 = vmatprep.subr.mxu0 0.0
    %1588 = vmatpush1.msra.mxu0 0.0
    %1589 = vmatprep.subr.mxu0 0.0
    %1590 = vmatpush1.msra.mxu0 0.0
    %1591 = vmatprep.subr.mxu0 0.0
    %1592 = vmatpush1.msra.mxu0 0.0
    %1593 = vmatprep.subr.mxu0 0.0
    %1594 = vmatpush1.msra.mxu0 0.0
    %1595 = vmatprep.subr.mxu0 0.0
    %1596 = vmatpush1.msra.mxu0 0.0
    %1597 = vmatprep.subr.mxu0 0.0
    %1598 = vmatpush1.msra.mxu0 0.0
    %1599 = vmatprep.subr.mxu0 0.0
    %1600 = vmatpush1.msra.mxu0 0.0
    %1601 = vmatprep.subr.mxu0 0.0
    %1602 = vmatpush1.msra.mxu0 0.0
    %1603 = vmatprep.subr.mxu0 0.0
    %1604 = vmatpush1.msra.mxu0 0.0
    %1605 = vmatprep.subr.mxu0 0.0
    %1606 = vmatpush1.msra.mxu0 0.0
    %1607 = vmatprep.subr.mxu0 0.0
    %1608 = vmatpush1.msra.mxu0 0.0
    %1609 = vmatprep.subr.mxu0 0.0
    %1610 = vmatpush1.msra.mxu0 0.0
    %1611 = vmatprep.subr.mxu0 0.0
    %1612 = vmatpush1.msra.mxu0 0.0
    %1613 = vmatprep.subr.mxu0 0.0
    %1614 = vmatpush1.msra.mxu0 0.0
    %1615 = vmatprep.subr.mxu0 0.0
    %1616 = vmatpush1.msra.mxu0 0.0
    %1617 = vmatprep.subr.mxu0 0.0
    %1618 = vmatpush1.msra.mxu0 0.0
    %1619 = vmatprep.mubr.f32.mxu0 0.0
    %1620 = vmatmul.mubr.f32.gmra.mrb[0].mxu0 %v1531
    %v1621 = vpop.f32.mrb[0].mxu0
    %v1622 = vadd.f32 0.0, %v1621
    %v1623 = vpop.f32.mrb[0].mxu0
    %v1624 = vadd.f32 0.0, %v1623
    %1625 = vmatprep.mubr.f32.mxu0 0.0
    %1626 = vmatmul.mubr.f32.gmra.mrb[0].mxu0 %v1534
    %v1627 = vpop.f32.mrb[0].mxu0
    %v1628 = vadd.f32 0.0, %v1627
    %v1629 = vpop.f32.mrb[0].mxu0
    %v1630 = vadd.f32 0.0, %v1629
    %1631 = vmatprep.mubr.f32.mxu0 0.0
    %1632 = vmatmul.mubr.f32.gmra.mrb[0].mxu0 %v1537
    %v1633 = vpop.f32.mrb[0].mxu0
    %v1634 = vadd.f32 0.0, %v1633
    %v1635 = vpop.f32.mrb[0].mxu0
    %v1636 = vadd.f32 0.0, %v1635
    %1637 = vmatprep.mubr.f32.mxu0 0.0
    %1638 = vmatmul.mubr.f32.gmra.mrb[0].mxu0 %v1540
    %v1639 = vpop.f32.mrb[0].mxu0
    %v1640 = vadd.f32 0.0, %v1639
    %v1641 = vpop.f32.mrb[0].mxu0
    %v1642 = vadd.f32 0.0, %v1641
    %1643 = vdwg.mxu0
    %1644 = vmatprep.subr.mxu0 %v1553
    %1645 = vmatpush1.msra.mxu0 %v1550
    %1646 = vmatprep.subr.mxu0 0.0
    %1647 = vmatpush1.msra.mxu0 0.0
    %1648 = vmatprep.subr.mxu0 0.0
    %1649 = vmatpush1.msra.mxu0 0.0
    %1650 = vmatprep.subr.mxu0 0.0
    %1651 = vmatpush1.msra.mxu0 0.0
    %1652 = vmatprep.subr.mxu0 0.0
    %1653 = vmatpush1.msra.mxu0 0.0
    %1654 = vmatprep.subr.mxu0 0.0
    %1655 = vmatpush1.msra.mxu0 0.0
    %1656 = vmatprep.subr.mxu0 0.0
    %1657 = vmatpush1.msra.mxu0 0.0
    %1658 = vmatprep.subr.mxu0 0.0
    %1659 = vmatpush1.msra.mxu0 0.0
    %1660 = vmatprep.subr.mxu0 0.0
    %1661 = vmatpush1.msra.mxu0 0.0
    %1662 = vmatprep.subr.mxu0 0.0
    %1663 = vmatpush1.msra.mxu0 0.0
    %1664 = vmatprep.subr.mxu0 0.0
    %1665 = vmatpush1.msra.mxu0 0.0
    %1666 = vmatprep.subr.mxu0 0.0
    %1667 = vmatpush1.msra.mxu0 0.0
    %1668 = vmatprep.subr.mxu0 0.0
    %1669 = vmatpush1.msra.mxu0 0.0
    %1670 = vmatprep.subr.mxu0 0.0
    %1671 = vmatpush1.msra.mxu0 0.0
    %1672 = vmatprep.subr.mxu0 0.0
    %1673 = vmatpush1.msra.mxu0 0.0
    %1674 = vmatprep.subr.mxu0 0.0
    %1675 = vmatpush1.msra.mxu0 0.0
    %1676 = vmatprep.subr.mxu0 0.0
    %1677 = vmatpush1.msra.mxu0 0.0
    %1678 = vmatprep.subr.mxu0 0.0
    %1679 = vmatpush1.msra.mxu0 0.0
    %1680 = vmatprep.subr.mxu0 0.0
    %1681 = vmatpush1.msra.mxu0 0.0
    %1682 = vmatprep.subr.mxu0 0.0
    %1683 = vmatpush1.msra.mxu0 0.0
    %1684 = vmatprep.subr.mxu0 0.0
    %1685 = vmatpush1.msra.mxu0 0.0
    %1686 = vmatprep.subr.mxu0 0.0
    %1687 = vmatpush1.msra.mxu0 0.0
    %1688 = vmatprep.subr.mxu0 0.0
    %1689 = vmatpush1.msra.mxu0 0.0
    %1690 = vmatprep.subr.mxu0 0.0
    %1691 = vmatpush1.msra.mxu0 0.0
    %1692 = vmatprep.subr.mxu0 0.0
    %1693 = vmatpush1.msra.mxu0 0.0
    %1694 = vmatprep.subr.mxu0 0.0
    %1695 = vmatpush1.msra.mxu0 0.0
    %1696 = vmatprep.subr.mxu0 0.0
    %1697 = vmatpush1.msra.mxu0 0.0
    %1698 = vmatprep.subr.mxu0 0.0
    %1699 = vmatpush1.msra.mxu0 0.0
    %1700 = vmatprep.subr.mxu0 0.0
    %1701 = vmatpush1.msra.mxu0 0.0
    %1702 = vmatprep.subr.mxu0 0.0
    %1703 = vmatpush1.msra.mxu0 0.0
    %1704 = vmatprep.subr.mxu0 0.0
    %1705 = vmatpush1.msra.mxu0 0.0
    %1706 = vmatprep.subr.mxu0 0.0
    %1707 = vmatpush1.msra.mxu0 0.0
    %1708 = vmatprep.mubr.f32.mxu0 0.0
    %1709 = vmatmul.mubr.f32.gmra.mrb[0].mxu0 %v1531
    %v1710 = vpop.f32.mrb[0].mxu0
    %v1711 = vadd.f32 0.0, %v1710
    %v1712 = vpop.f32.mrb[0].mxu0
    %v1713 = vadd.f32 0.0, %v1712
    %1714 = vmatprep.mubr.f32.mxu0 0.0
    %1715 = vmatmul.mubr.f32.gmra.mrb[0].mxu0 %v1534
    %v1716 = vpop.f32.mrb[0].mxu0
    %v1717 = vadd.f32 0.0, %v1716
    %v1718 = vpop.f32.mrb[0].mxu0
    %v1719 = vadd.f32 0.0, %v1718
    %1720 = vmatprep.mubr.f32.mxu0 0.0
    %1721 = vmatmul.mubr.f32.gmra.mrb[0].mxu0 %v1537
    %v1722 = vpop.f32.mrb[0].mxu0
    %v1723 = vadd.f32 0.0, %v1722
    %v1724 = vpop.f32.mrb[0].mxu0
    %v1725 = vadd.f32 0.0, %v1724
    %1726 = vmatprep.mubr.f32.mxu0 0.0
    %1727 = vmatmul.mubr.f32.gmra.mrb[0].mxu0 %v1540
    %v1728 = vpop.f32.mrb[0].mxu0
    %v1729 = vadd.f32 0.0, %v1728
    %v1730 = vpop.f32.mrb[0].mxu0
    %v1731 = vadd.f32 0.0, %v1730
    %1732 = vdwg.mxu0
    %v1734 = vsel %vm1542, %v1521, 0
    %v1737 = vsel %vm1542, %v1522, 0
    %v1740 = vsel %vm1542, %v1523, 0
    %v1743 = vsel %vm1542, %v1524, 0
    %1745 = vmatprep.subr.mxu0 %v1737
    %1746 = vmatpush1.msra.mxu0 %v1734
    %1747 = vmatprep.subr.mxu0 0.0
    %1748 = vmatpush1.msra.mxu0 0.0
    %1749 = vmatprep.subr.mxu0 0.0
    %1750 = vmatpush1.msra.mxu0 0.0
    %1751 = vmatprep.subr.mxu0 0.0
    %1752 = vmatpush1.msra.mxu0 0.0
    %1753 = vmatprep.subr.mxu0 0.0
    %1754 = vmatpush1.msra.mxu0 0.0
    %1755 = vmatprep.subr.mxu0 0.0
    %1756 = vmatpush1.msra.mxu0 0.0
    %1757 = vmatprep.subr.mxu0 0.0
    %1758 = vmatpush1.msra.mxu0 0.0
    %1759 = vmatprep.subr.mxu0 0.0
    %1760 = vmatpush1.msra.mxu0 0.0
    %1761 = vmatprep.subr.mxu0 0.0
    %1762 = vmatpush1.msra.mxu0 0.0
    %1763 = vmatprep.subr.mxu0 0.0
    %1764 = vmatpush1.msra.mxu0 0.0
    %1765 = vmatprep.subr.mxu0 0.0
    %1766 = vmatpush1.msra.mxu0 0.0
    %1767 = vmatprep.subr.mxu0 0.0
    %1768 = vmatpush1.msra.mxu0 0.0
    %1769 = vmatprep.subr.mxu0 0.0
    %1770 = vmatpush1.msra.mxu0 0.0
    %1771 = vmatprep.subr.mxu0 0.0
    %1772 = vmatpush1.msra.mxu0 0.0
    %1773 = vmatprep.subr.mxu0 0.0
    %1774 = vmatpush1.msra.mxu0 0.0
    %1775 = vmatprep.subr.mxu0 0.0
    %1776 = vmatpush1.msra.mxu0 0.0
    %1777 = vmatprep.subr.mxu0 0.0
    %1778 = vmatpush1.msra.mxu0 0.0
    %1779 = vmatprep.subr.mxu0 0.0
    %1780 = vmatpush1.msra.mxu0 0.0
    %1781 = vmatprep.subr.mxu0 0.0
    %1782 = vmatpush1.msra.mxu0 0.0
    %1783 = vmatprep.subr.mxu0 0.0
    %1784 = vmatpush1.msra.mxu0 0.0
    %1785 = vmatprep.subr.mxu0 0.0
    %1786 = vmatpush1.msra.mxu0 0.0
    %1787 = vmatprep.subr.mxu0 0.0
    %1788 = vmatpush1.msra.mxu0 0.0
    %1789 = vmatprep.subr.mxu0 0.0
    %1790 = vmatpush1.msra.mxu0 0.0
    %1791 = vmatprep.subr.mxu0 0.0
    %1792 = vmatpush1.msra.mxu0 0.0
    %1793 = vmatprep.subr.mxu0 0.0
    %1794 = vmatpush1.msra.mxu0 0.0
    %1795 = vmatprep.subr.mxu0 0.0
    %1796 = vmatpush1.msra.mxu0 0.0
    %1797 = vmatprep.subr.mxu0 0.0
    %1798 = vmatpush1.msra.mxu0 0.0
    %1799 = vmatprep.subr.mxu0 0.0
    %1800 = vmatpush1.msra.mxu0 0.0
    %1801 = vmatprep.subr.mxu0 0.0
    %1802 = vmatpush1.msra.mxu0 0.0
    %1803 = vmatprep.subr.mxu0 0.0
    %1804 = vmatpush1.msra.mxu0 0.0
    %1805 = vmatprep.subr.mxu0 0.0
    %1806 = vmatpush1.msra.mxu0 0.0
    %1807 = vmatprep.subr.mxu0 0.0
    %1808 = vmatpush1.msra.mxu0 0.0
    %1809 = vmatprep.mubr.f32.mxu0 0.0
    %1810 = vmatmul.mubr.f32.gmra.mrb[0].mxu0 %v1531
    %v1811 = vpop.f32.mrb[0].mxu0
    %v1812 = vadd.f32 0.0, %v1811
    %v1813 = vpop.f32.mrb[0].mxu0
    %v1814 = vadd.f32 0.0, %v1813
    %1815 = vmatprep.mubr.f32.mxu0 0.0
    %1816 = vmatmul.mubr.f32.gmra.mrb[0].mxu0 %v1534
    %v1817 = vpop.f32.mrb[0].mxu0
    %v1818 = vadd.f32 0.0, %v1817
    %v1819 = vpop.f32.mrb[0].mxu0
    %v1820 = vadd.f32 0.0, %v1819
    %1821 = vmatprep.mubr.f32.mxu0 0.0
    %1822 = vmatmul.mubr.f32.gmra.mrb[0].mxu0 %v1537
    %v1823 = vpop.f32.mrb[0].mxu0
    %v1824 = vadd.f32 0.0, %v1823
    %v1825 = vpop.f32.mrb[0].mxu0
    %v1826 = vadd.f32 0.0, %v1825
    %1827 = vmatprep.mubr.f32.mxu0 0.0
    %1828 = vmatmul.mubr.f32.gmra.mrb[0].mxu0 %v1540
    %v1829 = vpop.f32.mrb[0].mxu0
    %v1830 = vadd.f32 0.0, %v1829
    %v1831 = vpop.f32.mrb[0].mxu0
    %v1832 = vadd.f32 0.0, %v1831
    %1833 = vdwg.mxu0
    %1834 = vmatprep.subr.mxu0 %v1743
    %1835 = vmatpush1.msra.mxu0 %v1740
    %1836 = vmatprep.subr.mxu0 0.0
    %1837 = vmatpush1.msra.mxu0 0.0
    %1838 = vmatprep.subr.mxu0 0.0
    %1839 = vmatpush1.msra.mxu0 0.0
    %1840 = vmatprep.subr.mxu0 0.0
    %1841 = vmatpush1.msra.mxu0 0.0
    %1842 = vmatprep.subr.mxu0 0.0
    %1843 = vmatpush1.msra.mxu0 0.0
    %1844 = vmatprep.subr.mxu0 0.0
    %1845 = vmatpush1.msra.mxu0 0.0
    %1846 = vmatprep.subr.mxu0 0.0
    %1847 = vmatpush1.msra.mxu0 0.0
    %1848 = vmatprep.subr.mxu0 0.0
    %1849 = vmatpush1.msra.mxu0 0.0
    %1850 = vmatprep.subr.mxu0 0.0
    %1851 = vmatpush1.msra.mxu0 0.0
    %1852 = vmatprep.subr.mxu0 0.0
    %1853 = vmatpush1.msra.mxu0 0.0
    %1854 = vmatprep.subr.mxu0 0.0
    %1855 = vmatpush1.msra.mxu0 0.0
    %1856 = vmatprep.subr.mxu0 0.0
    %1857 = vmatpush1.msra.mxu0 0.0
    %1858 = vmatprep.subr.mxu0 0.0
    %1859 = vmatpush1.msra.mxu0 0.0
    %1860 = vmatprep.subr.mxu0 0.0
    %1861 = vmatpush1.msra.mxu0 0.0
    %1862 = vmatprep.subr.mxu0 0.0
    %1863 = vmatpush1.msra.mxu0 0.0
    %1864 = vmatprep.subr.mxu0 0.0
    %1865 = vmatpush1.msra.mxu0 0.0
    %1866 = vmatprep.subr.mxu0 0.0
    %1867 = vmatpush1.msra.mxu0 0.0
    %1868 = vmatprep.subr.mxu0 0.0
    %1869 = vmatpush1.msra.mxu0 0.0
    %1870 = vmatprep.subr.mxu0 0.0
    %1871 = vmatpush1.msra.mxu0 0.0
    %1872 = vmatprep.subr.mxu0 0.0
    %1873 = vmatpush1.msra.mxu0 0.0
    %1874 = vmatprep.subr.mxu0 0.0
    %1875 = vmatpush1.msra.mxu0 0.0
    %1876 = vmatprep.subr.mxu0 0.0
    %1877 = vmatpush1.msra.mxu0 0.0
    %1878 = vmatprep.subr.mxu0 0.0
    %1879 = vmatpush1.msra.mxu0 0.0
    %1880 = vmatprep.subr.mxu0 0.0
    %1881 = vmatpush1.msra.mxu0 0.0
    %1882 = vmatprep.subr.mxu0 0.0
    %1883 = vmatpush1.msra.mxu0 0.0
    %1884 = vmatprep.subr.mxu0 0.0
    %1885 = vmatpush1.msra.mxu0 0.0
    %1886 = vmatprep.subr.mxu0 0.0
    %1887 = vmatpush1.msra.mxu0 0.0
    %1888 = vmatprep.subr.mxu0 0.0
    %1889 = vmatpush1.msra.mxu0 0.0
    %1890 = vmatprep.subr.mxu0 0.0
    %1891 = vmatpush1.msra.mxu0 0.0
    %1892 = vmatprep.subr.mxu0 0.0
    %1893 = vmatpush1.msra.mxu0 0.0
    %1894 = vmatprep.subr.mxu0 0.0
    %1895 = vmatpush1.msra.mxu0 0.0
    %1896 = vmatprep.subr.mxu0 0.0
    %1897 = vmatpush1.msra.mxu0 0.0
    %1898 = vmatprep.mubr.f32.mxu0 0.0
    %1899 = vmatmul.mubr.f32.gmra.mrb[0].mxu0 %v1531
    %v1900 = vpop.f32.mrb[0].mxu0
    %v1901 = vadd.f32 0.0, %v1900
    %v1902 = vpop.f32.mrb[0].mxu0
    %v1903 = vadd.f32 0.0, %v1902
    %1904 = vmatprep.mubr.f32.mxu0 0.0
    %1905 = vmatmul.mubr.f32.gmra.mrb[0].mxu0 %v1534
    %v1906 = vpop.f32.mrb[0].mxu0
    %v1907 = vadd.f32 0.0, %v1906
    %v1908 = vpop.f32.mrb[0].mxu0
    %v1909 = vadd.f32 0.0, %v1908
    %1910 = vmatprep.mubr.f32.mxu0 0.0
    %1911 = vmatmul.mubr.f32.gmra.mrb[0].mxu0 %v1537
    %v1912 = vpop.f32.mrb[0].mxu0
    %v1913 = vadd.f32 0.0, %v1912
    %v1914 = vpop.f32.mrb[0].mxu0
    %v1915 = vadd.f32 0.0, %v1914
    %1916 = vmatprep.mubr.f32.mxu0 0.0
    %1917 = vmatmul.mubr.f32.gmra.mrb[0].mxu0 %v1540
    %v1918 = vpop.f32.mrb[0].mxu0
    %v1919 = vadd.f32 0.0, %v1918
    %v1920 = vpop.f32.mrb[0].mxu0
    %v1921 = vadd.f32 0.0, %v1920
    %1922 = vdwg.mxu0
    %v1923 = vmul.f32 %v463, %v1622
    %v1924 = vmul.f32 %v465, %v1624
    %v1925 = vmul.f32 %v516, %v1711
    %v1926 = vmul.f32 %v518, %v1713
    %v1927 = vmul.f32 %v467, %v1628
    %v1928 = vmul.f32 %v469, %v1630
    %v1929 = vmul.f32 %v520, %v1717
    %v1930 = vmul.f32 %v522, %v1719
    %v1931 = vmul.f32 %v473, %v1634
    %v1932 = vmul.f32 %v475, %v1636
    %v1933 = vmul.f32 %v526, %v1723
    %v1934 = vmul.f32 %v528, %v1725
    %v1935 = vmul.f32 %v477, %v1640
    %v1936 = vmul.f32 %v479, %v1642
    %v1937 = vmul.f32 %v530, %v1729
    %v1938 = vmul.f32 %v532, %v1731
    %v1939 = vadd.f32 %v1923, %v1812
    %v1940 = vadd.f32 %v1924, %v1814
    %v1941 = vadd.f32 %v1925, %v1901
    %v1942 = vadd.f32 %v1926, %v1903
    %v1943 = vadd.f32 %v1927, %v1818
    %v1944 = vadd.f32 %v1928, %v1820
    %v1945 = vadd.f32 %v1929, %v1907
    %v1946 = vadd.f32 %v1930, %v1909
    %v1947 = vadd.f32 %v1931, %v1824
    %v1948 = vadd.f32 %v1932, %v1826
    %v1949 = vadd.f32 %v1933, %v1913
    %v1950 = vadd.f32 %v1934, %v1915
    %v1951 = vadd.f32 %v1935, %v1830
    %v1952 = vadd.f32 %v1936, %v1832
    %v1953 = vadd.f32 %v1937, %v1919
    %v1954 = vadd.f32 %v1938, %v1921
    %v1955 = vsub.f32 0.0, %v1939
    %v1956 = vsub.f32 0.0, %v1940
    %v1957 = vsub.f32 0.0, %v1941
    %v1958 = vsub.f32 0.0, %v1942
    %v1959 = vsub.f32 0.0, %v1943
    %v1960 = vsub.f32 0.0, %v1944
    %v1961 = vsub.f32 0.0, %v1945
    %v1962 = vsub.f32 0.0, %v1946
    %v1963 = vsub.f32 0.0, %v1947
    %v1964 = vsub.f32 0.0, %v1948
    %v1965 = vsub.f32 0.0, %v1949
    %v1966 = vsub.f32 0.0, %v1950
    %v1967 = vsub.f32 0.0, %v1951
    %v1968 = vsub.f32 0.0, %v1952
    %v1969 = vsub.f32 0.0, %v1953
    %v1970 = vsub.f32 0.0, %v1954
    %v1971 = vmul.f32 %v1955, 1.442695
    %v1972 = vpow.pop %v1971
    %v1973 = vmul.f32 %v1956, 1.442695
    %v1974 = vpow.pop %v1973
    %v1975 = vmul.f32 %v1957, 1.442695
    %v1976 = vpow.pop %v1975
    %v1977 = vmul.f32 %v1958, 1.442695
    %v1978 = vpow.pop %v1977
    %v1979 = vmul.f32 %v1959, 1.442695
    %v1980 = vpow.pop %v1979
    %v1981 = vmul.f32 %v1960, 1.442695
    %v1982 = vpow.pop %v1981
    %v1983 = vmul.f32 %v1961, 1.442695
    %v1984 = vpow.pop %v1983
    %v1985 = vmul.f32 %v1962, 1.442695
    %v1986 = vpow.pop %v1985
    %v1987 = vmul.f32 %v1963, 1.442695
    %v1988 = vpow.pop %v1987
    %v1989 = vmul.f32 %v1964, 1.442695
    %v1990 = vpow.pop %v1989
    %v1991 = vmul.f32 %v1965, 1.442695
    %v1992 = vpow.pop %v1991
    %v1993 = vmul.f32 %v1966, 1.442695
    %v1994 = vpow.pop %v1993
    %v1995 = vmul.f32 %v1967, 1.442695
    %v1996 = vpow.pop %v1995
    %v1997 = vmul.f32 %v1968, 1.442695
    %v1998 = vpow.pop %v1997
    %v1999 = vmul.f32 %v1969, 1.442695
    %v2000 = vpow.pop %v1999
    %v2001 = vmul.f32 %v1970, 1.442695
    %v2002 = vpow.pop %v2001
    %v2003 = vadd.f32 %v1972, 1.0
    %v2004 = vadd.f32 %v1974, 1.0
    %v2005 = vadd.f32 %v1976, 1.0
    %v2006 = vadd.f32 %v1978, 1.0
    %v2007 = vadd.f32 %v1980, 1.0
    %v2008 = vadd.f32 %v1982, 1.0
    %v2009 = vadd.f32 %v1984, 1.0
    %v2010 = vadd.f32 %v1986, 1.0
    %v2011 = vadd.f32 %v1988, 1.0
    %v2012 = vadd.f32 %v1990, 1.0
    %v2013 = vadd.f32 %v1992, 1.0
    %v2014 = vadd.f32 %v1994, 1.0
    %v2015 = vadd.f32 %v1996, 1.0
    %v2016 = vadd.f32 %v1998, 1.0
    %v2017 = vadd.f32 %v2000, 1.0
    %v2018 = vadd.f32 %v2002, 1.0
    %v2019 = vrcp.pop %v2003
    %v2020 = vrcp.pop %v2004
    %v2021 = vrcp.pop %v2005
    %v2022 = vrcp.pop %v2006
    %v2023 = vrcp.pop %v2007
    %v2024 = vrcp.pop %v2008
    %v2025 = vrcp.pop %v2009
    %v2026 = vrcp.pop %v2010
    %v2027 = vrcp.pop %v2011
    %v2028 = vrcp.pop %v2012
    %v2029 = vrcp.pop %v2013
    %v2030 = vrcp.pop %v2014
    %v2031 = vrcp.pop %v2015
    %v2032 = vrcp.pop %v2016
    %v2033 = vrcp.pop %v2017
    %v2034 = vrcp.pop %v2018
    %v2035 = vmul.f32 %v1939, %v2019
    %v2036 = vmul.f32 %v1940, %v2020
    %v2037 = vmul.f32 %v1941, %v2021
    %v2038 = vmul.f32 %v1942, %v2022
    %v2039 = vmul.f32 %v1943, %v2023
    %v2040 = vmul.f32 %v1944, %v2024
    %v2041 = vmul.f32 %v1945, %v2025
    %v2042 = vmul.f32 %v1946, %v2026
    %v2043 = vmul.f32 %v1947, %v2027
    %v2044 = vmul.f32 %v1948, %v2028
    %v2045 = vmul.f32 %v1949, %v2029
    %v2046 = vmul.f32 %v1950, %v2030
    %v2047 = vmul.f32 %v1951, %v2031
    %v2048 = vmul.f32 %v1952, %v2032
    %v2049 = vmul.f32 %v1953, %v2033
    %v2050 = vmul.f32 %v1954, %v2034
    %2051 = vst [vmem:[#allocation2] sm:$0xff] %v2035
    %2052 = vst [vmem:[#allocation2 + $0x8] sm:$0xff] %v2036
    %2053 = vst [vmem:[#allocation2 + $0x10] sm:$0xff] %v2037
    %2054 = vst [vmem:[#allocation2 + $0x18] sm:$0xff] %v2038
    %2055 = vst [vmem:[#allocation2 + $0x20] sm:$0xff] %v2039
    %2056 = vst [vmem:[#allocation2 + $0x28] sm:$0xff] %v2040
    %2057 = vst [vmem:[#allocation2 + $0x30] sm:$0xff] %v2041
    %2058 = vst [vmem:[#allocation2 + $0x38] sm:$0xff] %v2042
    %2059 = vst [vmem:[#allocation2 + $0x40] sm:$0xff] %v2043
    %2060 = vst [vmem:[#allocation2 + $0x48] sm:$0xff] %v2044
    %2061 = vst [vmem:[#allocation2 + $0x50] sm:$0xff] %v2045
    %2062 = vst [vmem:[#allocation2 + $0x58] sm:$0xff] %v2046
    %2063 = vst [vmem:[#allocation2 + $0x60] sm:$0xff] %v2047
    %2064 = vst [vmem:[#allocation2 + $0x68] sm:$0xff] %v2048
    %2065 = vst [vmem:[#allocation2 + $0x70] sm:$0xff] %v2049
    %2066 = vst [vmem:[#allocation2 + $0x78] sm:$0xff] %v2050
    // Predicated region
    $region46: #{tpu_custom_call.1} parent=1 // pred_check
      _
    $region47: #{tpu_custom_call.1} parent=1 // pred_check_branch
      %2068 = sbr.rel (0) target = $region49
    $region48: #{tpu_custom_call.1} parent=1 // pred_region
      %s2070 = ssub.s32 2048, 2048
      %2071 = vsyncadd [#allocation3], %s2070
      %s2072 = sshll.u32 [#allocation2], 4
      %s2073 = int_to_ptr.vmem [resolvable:$true] %s2072
      %2078 = dma.vmem_to_hbm [thread:$0]  %s2073, 2048, %s11, [#allocation3], 512, 512, 32
    $region49: #{tpu_custom_call.1} parent=1 // pred_fallthru
      _
    // Predicated region
    $region50: #{tpu_custom_call.1} parent=1 // pred_check
      _
    $region51: #{tpu_custom_call.1} parent=1 // pred_check_branch
      %2080 = sbr.rel (0) target = $region53
    $region52: #{tpu_custom_call.1} parent=1 // pred_region
      %2081 = dma.done [#allocation3], 2048
    $region53: #{tpu_custom_call.1} parent=1 // pred_fallthru
      _
    %2082 = vsyncpa [#allocation3], 1

</llo_original>
